<compile_context>
chip_gen: v7x
topology: tpu7x:2x2x1
jax: 0.10.0
libtpu: 0.0.40
codegen_flags: <defaults>
</compile_context>

<pallas_src>
import functools

import jax
import jax.numpy as jnp
from jax.experimental import pallas as pl
from jax.experimental.pallas import tpu as pltpu


def _round_up(x, m):
    return (x + m - 1) // m * m


def _mlp_kernel(
    x_ref,
    w1_ref, b1_ref,
    w2_ref, b2_ref,
    w3_ref, b3_ref,
    wh1_ref, bh1_ref,
    wh2_ref, bh2_ref,
    policy_ref,
    value_ref,
    *,
    p_pad,
):
    """One batch tile: shared trunk + fused policy/value heads."""
    cdt = w1_ref.dtype  # compute dtype (bf16 or f32); accumulate in f32.

    def linear_relu(h, w_ref, b_ref):
        acc = jnp.dot(h, w_ref[...], preferred_element_type=jnp.float32)
        return jnp.maximum(acc + b_ref[...], 0.0).astype(cdt)

    # Shared trunk: Linear->ReLU->[Dropout]->Linear->ReLU->[Dropout]->Linear->ReLU
    h = linear_relu(x_ref[...], w1_ref, b1_ref)   # [TB, 512]
    h = linear_relu(h, w2_ref, b2_ref)            # [TB, 256]
    h = linear_relu(h, w3_ref, b3_ref)            # [TB, 256]

    # Fused first layers of both heads: [TB,256] = [policy 128 | value 128]
    hv = linear_relu(h, wh1_ref, bh1_ref)

    # Fused, padded second layers (block-diagonal weights):
    #   columns [0, p_pad)         -> policy logits (zero-padded past action_size)
    #   columns [p_pad, p_pad+128) -> value pre-tanh in column 0, zeros elsewhere
    out = jnp.dot(hv, wh2_ref[...], preferred_element_type=jnp.float32) + bh2_ref[...]
    policy_ref[...] = out[:, :p_pad].astype(policy_ref.dtype)
    value_ref[...] = jnp.tanh(out[:, p_pad:]).astype(value_ref.dtype)


def pack_params(raw, compute_dtype=jnp.bfloat16):
    """Pad / fuse raw [in,out] weights and [1,out] biases into the kernel layout."""
    input_size = raw["w1"].shape[0]
    action_size = raw["wp2"].shape[1]
    in_pad = _round_up(max(input_size, 1), 128)
    p_pad = _round_up(max(action_size, 1), 128)

    # Zero-pad the input feature dim of the first weight.
    w1 = jnp.zeros((in_pad, 512), jnp.float32).at[:input_size].set(raw["w1"])

    # Fuse head first layers: [256, 128] | [256, 128] -> [256, 256].
    wh1 = jnp.concatenate([raw["wp1"], raw["wv1"]], axis=1)
    bh1 = jnp.concatenate([raw["bp1"], raw["bv1"]], axis=1)

    # Fuse + pad head second layers into one block-diagonal [256, p_pad+128].
    wh2 = jnp.zeros((256, p_pad + 128), jnp.float32)
    wh2 = wh2.at[:128, :action_size].set(raw["wp2"])        # policy block
    wh2 = wh2.at[128:, p_pad:p_pad + 1].set(raw["wv2"])     # value block (col 0)
    bh2 = jnp.zeros((1, p_pad + 128), jnp.float32)
    bh2 = bh2.at[:, :action_size].set(raw["bp2"])
    bh2 = bh2.at[:, p_pad:p_pad + 1].set(raw["bv2"])

    cd = compute_dtype
    return {
        "w1": w1.astype(cd), "b1": raw["b1"].astype(jnp.float32),
        "w2": raw["w2"].astype(cd), "b2": raw["b2"].astype(jnp.float32),
        "w3": raw["w3"].astype(cd), "b3": raw["b3"].astype(jnp.float32),
        "wh1": wh1.astype(cd), "bh1": bh1.astype(jnp.float32),
        "wh2": wh2.astype(cd), "bh2": bh2.astype(jnp.float32),
    }


@functools.partial(jax.jit, static_argnames=("action_size",))
def mlp_forward(x, packed, action_size):
    """x: [B, input_size] f32. Returns (policy [B, action_size], value [B, 1])."""
    B, input_size = x.shape
    in_pad = packed["w1"].shape[0]
    p_pad = packed["wh2"].shape[1] - 128
    cdt = packed["w1"].dtype

    # Batch tile: 8-row aligned, up to 256 rows per grid step.
    TB = min(256, _round_up(max(B, 1), 8))
    B_pad = _round_up(B, TB)

    xp = jnp.zeros((B_pad, in_pad), cdt).at[:B, :input_size].set(x.astype(cdt))

    row = lambda i: (i, 0)      # batch-tiled arrays
    const = lambda i: (0, 0)    # VMEM-resident weights / biases

    in_specs = [
        pl.BlockSpec((TB, in_pad), row),
        pl.BlockSpec(packed["w1"].shape, const), pl.BlockSpec(packed["b1"].shape, const),
        pl.BlockSpec(packed["w2"].shape, const), pl.BlockSpec(packed["b2"].shape, const),
        pl.BlockSpec(packed["w3"].shape, const), pl.BlockSpec(packed["b3"].shape, const),
        pl.BlockSpec(packed["wh1"].shape, const), pl.BlockSpec(packed["bh1"].shape, const),
        pl.BlockSpec(packed["wh2"].shape, const), pl.BlockSpec(packed["bh2"].shape, const),
    ]
    out_specs = (
        pl.BlockSpec((TB, p_pad), row),   # lane-dense (multiple of 128)
        pl.BlockSpec((TB, 128), row),     # lane-dense value block
    )

    policy_pad, value_pad = pl.pallas_call(
        functools.partial(_mlp_kernel, p_pad=p_pad),
        grid=(B_pad // TB,),
        in_specs=in_specs,
        out_specs=out_specs,
        out_shape=(
            jax.ShapeDtypeStruct((B_pad, p_pad), jnp.float32),
            jax.ShapeDtypeStruct((B_pad, 128), jnp.float32),
        ),
        compiler_params=pltpu.CompilerParams(
            dimension_semantics=("parallel",),
            vmem_limit_bytes=32 * 1024 * 1024,
        ),
    )(xp, packed["w1"], packed["b1"], packed["w2"], packed["b2"],
      packed["w3"], packed["b3"], packed["wh1"], packed["bh1"],
      packed["wh2"], packed["bh2"])

    return policy_pad[:B, :action_size], value_pad[:B, :1]


def init_params(key, input_size, action_size):
    """Deterministic init mirroring nn.Linear shapes (stored as [in,out] / [1,out])."""
    dims = {
        "1": (input_size, 512),
        "2": (512, 256),
        "3": (256, 256),
        "p1": (256, 128),
        "p2": (128, action_size),
        "v1": (256, 128),
        "v2": (128, 1),
    }
    params = {}
    keys = jax.random.split(key, 2 * len(dims))
    for i, (name, (fan_in, fan_out)) in enumerate(dims.items()):
        bound = 1.0 / jnp.sqrt(jnp.float32(fan_in))
        params[f"w{name}"] = jax.random.uniform(
            keys[2 * i], (fan_in, fan_out), jnp.float32, -bound, bound
        )
        params[f"b{name}"] = jax.random.uniform(
            keys[2 * i + 1], (1, fan_out), jnp.float32, -bound, bound
        )
    return params


def mlp_forward_ref(x, p):
    """Pure-JAX f32 reference of the same forward pass."""
    h = jnp.maximum(x @ p["w1"] + p["b1"], 0.0)
    h = jnp.maximum(h @ p["w2"] + p["b2"], 0.0)
    h = jnp.maximum(h @ p["w3"] + p["b3"], 0.0)
    pol = jnp.maximum(h @ p["wp1"] + p["bp1"], 0.0) @ p["wp2"] + p["bp2"]
    val = jnp.tanh(jnp.maximum(h @ p["wv1"] + p["bv1"], 0.0) @ p["wv2"] + p["bv2"])
    return pol, val


if __name__ == "__main__":
    key = jax.random.PRNGKey(0)
    k_param, k_x1, k_x2 = jax.random.split(key, 3)

    input_size = 64
    action_size = 16
    raw = init_params(k_param, input_size, action_size)

    # --- strict correctness check: f32 compute path, small batch ---
    batch = 8
    x = jax.random.normal(k_x1, (batch, input_size), jnp.float32)
    packed_f32 = pack_params(raw, jnp.float32)
    policy, value = mlp_forward(x, packed_f32, action_size=action_size)
    jax.block_until_ready((policy, value))
    pol_ref, val_ref = mlp_forward_ref(x, raw)
    assert policy.shape == (batch, action_size)
    assert value.shape == (batch, 1)
    assert jnp.allclose(policy, pol_ref, atol=1e-4, rtol=1e-4)
    assert jnp.allclose(value, val_ref, atol=1e-4, rtol=1e-4)

    # --- bf16 fast path: non-tile-multiple batch exercises grid>1 + padding ---
    batch2 = 300
    x2 = jax.random.normal(k_x2, (batch2, input_size), jnp.float32)
    packed_bf16 = pack_params(raw, jnp.bfloat16)
    policy2, value2 = mlp_forward(x2, packed_bf16, action_size=action_size)
    jax.block_until_ready((policy2, value2))
    pol_ref2, val_ref2 = mlp_forward_ref(x2, raw)
    assert policy2.shape == (batch2, action_size)
    assert value2.shape == (batch2, 1)
    assert jnp.allclose(policy2, pol_ref2, atol=1e-1, rtol=1e-1)
    assert jnp.allclose(value2, val_ref2, atol=1e-1, rtol=1e-1)

    print("KERNEL_OK")
</pallas_src>

<mosaic_0001>
module attributes {stable_mosaic.version = 11 : i64} {
  func.func @_mlp_kernel(%arg0: i32, %arg1: memref<8x128xf32, #tpu.memory_space<vmem>>, %arg2: memref<128x512xf32, #tpu.memory_space<vmem>>, %arg3: memref<1x512xf32, #tpu.memory_space<vmem>>, %arg4: memref<512x256xf32, #tpu.memory_space<vmem>>, %arg5: memref<1x256xf32, #tpu.memory_space<vmem>>, %arg6: memref<256x256xf32, #tpu.memory_space<vmem>>, %arg7: memref<1x256xf32, #tpu.memory_space<vmem>>, %arg8: memref<256x256xf32, #tpu.memory_space<vmem>>, %arg9: memref<1x256xf32, #tpu.memory_space<vmem>>, %arg10: memref<256x256xf32, #tpu.memory_space<vmem>>, %arg11: memref<1x256xf32, #tpu.memory_space<vmem>>, %arg12: memref<8x128xf32, #tpu.memory_space<vmem>>, %arg13: memref<8x128xf32, #tpu.memory_space<vmem>>) attributes {dimension_semantics = [#tpu.dimension_semantics<parallel>], iteration_bounds = array<i64: 1>, scalar_prefetch = 0 : i64, scratch_operands = 0 : i64, tpu.core_type = #tpu.core_type<tc>, window_params = [{transform_indices = @transform_0, window_bounds = array<i64: 8, 128>}, {pipeline_mode = #tpu.pipeline_mode<synchronous>, transform_indices = @transform_1, window_bounds = array<i64: 128, 512>}, {pipeline_mode = #tpu.pipeline_mode<synchronous>, transform_indices = @transform_2, window_bounds = array<i64: 1, 512>}, {pipeline_mode = #tpu.pipeline_mode<synchronous>, transform_indices = @transform_3, window_bounds = array<i64: 512, 256>}, {pipeline_mode = #tpu.pipeline_mode<synchronous>, transform_indices = @transform_4, window_bounds = array<i64: 1, 256>}, {pipeline_mode = #tpu.pipeline_mode<synchronous>, transform_indices = @transform_5, window_bounds = array<i64: 256, 256>}, {pipeline_mode = #tpu.pipeline_mode<synchronous>, transform_indices = @transform_6, window_bounds = array<i64: 1, 256>}, {pipeline_mode = #tpu.pipeline_mode<synchronous>, transform_indices = @transform_7, window_bounds = array<i64: 256, 256>}, {pipeline_mode = #tpu.pipeline_mode<synchronous>, transform_indices = @transform_8, window_bounds = array<i64: 1, 256>}, {pipeline_mode = #tpu.pipeline_mode<synchronous>, transform_indices = @transform_9, window_bounds = array<i64: 256, 256>}, {pipeline_mode = #tpu.pipeline_mode<synchronous>, transform_indices = @transform_10, window_bounds = array<i64: 1, 256>}, {transform_indices = @transform_11, window_bounds = array<i64: 8, 128>}, {transform_indices = @transform_12, window_bounds = array<i64: 8, 128>}]} {
    %c0 = arith.constant 0 : index
    %c0_0 = arith.constant 0 : index
    %0 = vector.load %arg1[%c0, %c0_0] : memref<8x128xf32, #tpu.memory_space<vmem>>, vector<8x128xf32>
    %c0_1 = arith.constant 0 : index
    %c0_2 = arith.constant 0 : index
    %1 = vector.load %arg2[%c0_1, %c0_2] : memref<128x512xf32, #tpu.memory_space<vmem>>, vector<128x512xf32>
    %cst = arith.constant dense<0.000000e+00> : vector<8x512xf32>
    %2 = tpu.matmul %0, %1, %cst {dimension_numbers = #tpu.dot_dimension_numbers<[1], [0], [0], [1], [0, 0, 1, 1], [], []>} : vector<8x128xf32>, vector<128x512xf32>, vector<8x512xf32> -> vector<8x512xf32>
    %c0_3 = arith.constant 0 : index
    %c0_4 = arith.constant 0 : index
    %3 = vector.load %arg3[%c0_3, %c0_4] : memref<1x512xf32, #tpu.memory_space<vmem>>, vector<1x512xf32>
    %4 = vector.broadcast %3 : vector<1x512xf32> to vector<8x512xf32>
    %5 = arith.addf %2, %4 : vector<8x512xf32>
    %cst_5 = arith.constant 0.000000e+00 : f32
    %6 = vector.broadcast %cst_5 : f32 to vector<8x512xf32>
    %7 = arith.maximumf %5, %6 : vector<8x512xf32>
    %c0_6 = arith.constant 0 : index
    %c0_7 = arith.constant 0 : index
    %8 = vector.load %arg4[%c0_6, %c0_7] : memref<512x256xf32, #tpu.memory_space<vmem>>, vector<512x256xf32>
    %cst_8 = arith.constant dense<0.000000e+00> : vector<8x256xf32>
    %9 = tpu.matmul %7, %8, %cst_8 {dimension_numbers = #tpu.dot_dimension_numbers<[1], [0], [0], [1], [0, 0, 1, 1], [], []>} : vector<8x512xf32>, vector<512x256xf32>, vector<8x256xf32> -> vector<8x256xf32>
    %c0_9 = arith.constant 0 : index
    %c0_10 = arith.constant 0 : index
    %10 = vector.load %arg5[%c0_9, %c0_10] : memref<1x256xf32, #tpu.memory_space<vmem>>, vector<1x256xf32>
    %11 = vector.broadcast %10 : vector<1x256xf32> to vector<8x256xf32>
    %12 = arith.addf %9, %11 : vector<8x256xf32>
    %cst_11 = arith.constant 0.000000e+00 : f32
    %13 = vector.broadcast %cst_11 : f32 to vector<8x256xf32>
    %14 = arith.maximumf %12, %13 : vector<8x256xf32>
    %c0_12 = arith.constant 0 : index
    %c0_13 = arith.constant 0 : index
    %15 = vector.load %arg6[%c0_12, %c0_13] : memref<256x256xf32, #tpu.memory_space<vmem>>, vector<256x256xf32>
    %cst_14 = arith.constant dense<0.000000e+00> : vector<8x256xf32>
    %16 = tpu.matmul %14, %15, %cst_14 {dimension_numbers = #tpu.dot_dimension_numbers<[1], [0], [0], [1], [0, 0, 1, 1], [], []>} : vector<8x256xf32>, vector<256x256xf32>, vector<8x256xf32> -> vector<8x256xf32>
    %c0_15 = arith.constant 0 : index
    %c0_16 = arith.constant 0 : index
    %17 = vector.load %arg7[%c0_15, %c0_16] : memref<1x256xf32, #tpu.memory_space<vmem>>, vector<1x256xf32>
    %18 = vector.broadcast %17 : vector<1x256xf32> to vector<8x256xf32>
    %19 = arith.addf %16, %18 : vector<8x256xf32>
    %cst_17 = arith.constant 0.000000e+00 : f32
    %20 = vector.broadcast %cst_17 : f32 to vector<8x256xf32>
    %21 = arith.maximumf %19, %20 : vector<8x256xf32>
    %c0_18 = arith.constant 0 : index
    %c0_19 = arith.constant 0 : index
    %22 = vector.load %arg8[%c0_18, %c0_19] : memref<256x256xf32, #tpu.memory_space<vmem>>, vector<256x256xf32>
    %cst_20 = arith.constant dense<0.000000e+00> : vector<8x256xf32>
    %23 = tpu.matmul %21, %22, %cst_20 {dimension_numbers = #tpu.dot_dimension_numbers<[1], [0], [0], [1], [0, 0, 1, 1], [], []>} : vector<8x256xf32>, vector<256x256xf32>, vector<8x256xf32> -> vector<8x256xf32>
    %c0_21 = arith.constant 0 : index
    %c0_22 = arith.constant 0 : index
    %24 = vector.load %arg9[%c0_21, %c0_22] : memref<1x256xf32, #tpu.memory_space<vmem>>, vector<1x256xf32>
    %25 = vector.broadcast %24 : vector<1x256xf32> to vector<8x256xf32>
    %26 = arith.addf %23, %25 : vector<8x256xf32>
    %cst_23 = arith.constant 0.000000e+00 : f32
    %27 = vector.broadcast %cst_23 : f32 to vector<8x256xf32>
    %28 = arith.maximumf %26, %27 : vector<8x256xf32>
    %c0_24 = arith.constant 0 : index
    %c0_25 = arith.constant 0 : index
    %29 = vector.load %arg10[%c0_24, %c0_25] : memref<256x256xf32, #tpu.memory_space<vmem>>, vector<256x256xf32>
    %cst_26 = arith.constant dense<0.000000e+00> : vector<8x256xf32>
    %30 = tpu.matmul %28, %29, %cst_26 {dimension_numbers = #tpu.dot_dimension_numbers<[1], [0], [0], [1], [0, 0, 1, 1], [], []>} : vector<8x256xf32>, vector<256x256xf32>, vector<8x256xf32> -> vector<8x256xf32>
    %c0_27 = arith.constant 0 : index
    %c0_28 = arith.constant 0 : index
    %31 = vector.load %arg11[%c0_27, %c0_28] : memref<1x256xf32, #tpu.memory_space<vmem>>, vector<1x256xf32>
    %32 = vector.broadcast %31 : vector<1x256xf32> to vector<8x256xf32>
    %33 = arith.addf %30, %32 : vector<8x256xf32>
    %34 = vector.extract_strided_slice %33 {offsets = [0, 0], sizes = [8, 128], strides = [1, 1]} : vector<8x256xf32> to vector<8x128xf32>
    %c0_29 = arith.constant 0 : index
    %c0_30 = arith.constant 0 : index
    %35 = vector.load %arg12[%c0_29, %c0_30] : memref<8x128xf32, #tpu.memory_space<vmem>>, vector<8x128xf32>
    tpu.vector_store %arg12[%c0_29, %c0_30], %34 {strides = array<i32>} : memref<8x128xf32, #tpu.memory_space<vmem>>, vector<8x128xf32>,
    %36 = vector.extract_strided_slice %33 {offsets = [0, 128], sizes = [8, 128], strides = [1, 1]} : vector<8x256xf32> to vector<8x128xf32>
    %37 = math.tanh %36 : vector<8x128xf32>
    %c0_31 = arith.constant 0 : index
    %c0_32 = arith.constant 0 : index
    %38 = vector.load %arg13[%c0_31, %c0_32] : memref<8x128xf32, #tpu.memory_space<vmem>>, vector<8x128xf32>
    tpu.vector_store %arg13[%c0_31, %c0_32], %37 {strides = array<i32>} : memref<8x128xf32, #tpu.memory_space<vmem>>, vector<8x128xf32>,
    return
  }
  func.func @transform_0(%arg0: i32) -> (i32, i32) {
    %c0_i32 = arith.constant 0 : i32
    %c0_i32_0 = arith.constant 0 : i32
    return %arg0, %c0_i32 : i32, i32
  }
  func.func @transform_1(%arg0: i32) -> (i32, i32) {
    %c0_i32 = arith.constant 0 : i32
    %c0_i32_0 = arith.constant 0 : i32
    %c0_i32_1 = arith.constant 0 : i32
    return %c0_i32, %c0_i32_0 : i32, i32
  }
  func.func @transform_2(%arg0: i32) -> (i32, i32) {
    %c0_i32 = arith.constant 0 : i32
    %c0_i32_0 = arith.constant 0 : i32
    %c0_i32_1 = arith.constant 0 : i32
    return %c0_i32, %c0_i32_0 : i32, i32
  }
  func.func @transform_3(%arg0: i32) -> (i32, i32) {
    %c0_i32 = arith.constant 0 : i32
    %c0_i32_0 = arith.constant 0 : i32
    %c0_i32_1 = arith.constant 0 : i32
    return %c0_i32, %c0_i32_0 : i32, i32
  }
  func.func @transform_4(%arg0: i32) -> (i32, i32) {
    %c0_i32 = arith.constant 0 : i32
    %c0_i32_0 = arith.constant 0 : i32
    %c0_i32_1 = arith.constant 0 : i32
    return %c0_i32, %c0_i32_0 : i32, i32
  }
  func.func @transform_5(%arg0: i32) -> (i32, i32) {
    %c0_i32 = arith.constant 0 : i32
    %c0_i32_0 = arith.constant 0 : i32
    %c0_i32_1 = arith.constant 0 : i32
    return %c0_i32, %c0_i32_0 : i32, i32
  }
  func.func @transform_6(%arg0: i32) -> (i32, i32) {
    %c0_i32 = arith.constant 0 : i32
    %c0_i32_0 = arith.constant 0 : i32
    %c0_i32_1 = arith.constant 0 : i32
    return %c0_i32, %c0_i32_0 : i32, i32
  }
  func.func @transform_7(%arg0: i32) -> (i32, i32) {
    %c0_i32 = arith.constant 0 : i32
    %c0_i32_0 = arith.constant 0 : i32
    %c0_i32_1 = arith.constant 0 : i32
    return %c0_i32, %c0_i32_0 : i32, i32
  }
  func.func @transform_8(%arg0: i32) -> (i32, i32) {
    %c0_i32 = arith.constant 0 : i32
    %c0_i32_0 = arith.constant 0 : i32
    %c0_i32_1 = arith.constant 0 : i32
    return %c0_i32, %c0_i32_0 : i32, i32
  }
  func.func @transform_9(%arg0: i32) -> (i32, i32) {
    %c0_i32 = arith.constant 0 : i32
    %c0_i32_0 = arith.constant 0 : i32
    %c0_i32_1 = arith.constant 0 : i32
    return %c0_i32, %c0_i32_0 : i32, i32
  }
  func.func @transform_10(%arg0: i32) -> (i32, i32) {
    %c0_i32 = arith.constant 0 : i32
    %c0_i32_0 = arith.constant 0 : i32
    %c0_i32_1 = arith.constant 0 : i32
    return %c0_i32, %c0_i32_0 : i32, i32
  }
  func.func @transform_11(%arg0: i32) -> (i32, i32) {
    %c0_i32 = arith.constant 0 : i32
    %c0_i32_0 = arith.constant 0 : i32
    return %arg0, %c0_i32 : i32, i32
  }
  func.func @transform_12(%arg0: i32) -> (i32, i32) {
    %c0_i32 = arith.constant 0 : i32
    %c0_i32_0 = arith.constant 0 : i32
    return %arg0, %c0_i32 : i32, i32
  }
}

</mosaic_0001>

<llo_original>
// kernel: mlp_forward.1
$region0: #{mlp_forward.1}
  #allocation0 [shape = 'u32[]', space=smem, size = 0x4, offset = 0x4, fixed_abs, tag = 'smem constant byte address 0x4 - core index']
  #allocation1 [shape = 'u32[144,128]{1,0:T(1,128)}', space=vmem, size = 0x12000, scoped, tag = 'internal scratch']
  %s0 = inlined_call_operand.vmem [shape: f32[8,128], index: 0, kind: input, shape index: {}]
  %s1 = inlined_call_operand.hbm [shape: f32[128,512], index: 1, kind: input, shape index: {}]
  %s2 = inlined_call_operand.vmem [shape: f32[1,512], index: 2, kind: input, shape index: {}]
  %s3 = inlined_call_operand.hbm [shape: f32[512,256], index: 3, kind: input, shape index: {}]
  %s4 = inlined_call_operand.vmem [shape: f32[1,256], index: 4, kind: input, shape index: {}]
  %s5 = inlined_call_operand.hbm [shape: f32[256,256], index: 5, kind: input, shape index: {}]
  %s6 = inlined_call_operand.vmem [shape: f32[1,256], index: 6, kind: input, shape index: {}]
  %s7 = inlined_call_operand.hbm [shape: f32[256,256], index: 7, kind: input, shape index: {}]
  %s8 = inlined_call_operand.vmem [shape: f32[1,256], index: 8, kind: input, shape index: {}]
  %s9 = inlined_call_operand.hbm [shape: f32[256,256], index: 9, kind: input, shape index: {}]
  %s10 = inlined_call_operand.vmem [shape: f32[1,256], index: 10, kind: input, shape index: {}]
  %s11 = inlined_call_operand.hbm [shape: f32[8,128], index: 11, kind: output, shape index: {0}]
  %s12 = inlined_call_operand.vmem [shape: f32[8,128], index: 12, kind: output, shape index: {1}]
  %13 = xla_tuple %s11, %s12
  %s14 = sld [smem:[#allocation0]]
  $region82: #{mlp_forward.1} parent=0
    _
  %s16 = ssub.s32 1, %s14
  %s17 = scalar_select 0, %s16, %s14
  $region1: #{mlp_forward.1} parent=0
    #allocation2 [shape = 'u8[262144]{0}', space=vmem, size = 0x40000, scoped, tag = 'input window, operand 1, single buffered']
    #allocation3 [shape = 's32[1]{0}', space=sflag, size = 0x4, scoped, tag = 'scoped memory for mlp_forward.1']
    #allocation4 [shape = 's32[1]{0}', space=sflag, size = 0x4, scoped, tag = 'scoped memory for mlp_forward.1']
    #allocation5 [shape = 'u8[524288]{0}', space=vmem, size = 0x80000, scoped, tag = 'input window, operand 3, single buffered']
    #allocation6 [shape = 's32[1]{0}', space=sflag, size = 0x4, scoped, tag = 'scoped memory for mlp_forward.1']
    #allocation7 [shape = 'u8[262144]{0}', space=vmem, size = 0x40000, scoped, tag = 'input window, operand 5, single buffered']
    #allocation8 [shape = 'u8[262144]{0}', space=vmem, size = 0x40000, scoped, tag = 'input window, operand 7, single buffered']
    #allocation9 [shape = 's32[1]{0}', space=sflag, size = 0x4, scoped, tag = 'scoped memory for mlp_forward.1']
    #allocation10 [shape = 'u8[262144]{0}', space=vmem, size = 0x40000, scoped, tag = 'input window, operand 9, single buffered']
    #allocation11 [shape = 'u8[4096]{0}', space=vmem, size = 0x1000, scoped, tag = 'output window, operand 0, single buffered']
    %18 = vsyncpa [#allocation3], 0
    %19 = vsyncpa [#allocation6], 0
    %20 = vsyncpa [#allocation9], 0
    %21 = vsyncpa [#allocation4], 0
    // Predicated region
    $region2: #{mlp_forward.1} parent=1 // pred_check
      _
    $region3: #{mlp_forward.1} parent=1 // pred_check_branch
      %23 = sbr.rel (0) target = $region5
    $region4: #{mlp_forward.1} parent=1 // pred_region
      _
    $region5: #{mlp_forward.1} parent=1 // pred_fallthru
      _
    // Predicated region
    $region6: #{mlp_forward.1} parent=1 // pred_check
      _
    $region7: #{mlp_forward.1} parent=1 // pred_check_branch
      %25 = sbr.rel (0) target = $region9
    $region8: #{mlp_forward.1} parent=1 // pred_region
      %s27 = ssub.s32 8192, 8192
      %28 = vsyncadd [#allocation3], %s27
      %s29 = sshll.u32 [#allocation2], 4
      %s30 = int_to_ptr.vmem [resolvable:$true] %s29
      %35 = dma.hbm_to_vmem [thread:$0]  %s1, 8192, %s30, [#allocation3], 512, 512, 32
    $region9: #{mlp_forward.1} parent=1 // pred_fallthru
      _
    // Predicated region
    $region10: #{mlp_forward.1} parent=1 // pred_check
      _
    $region11: #{mlp_forward.1} parent=1 // pred_check_branch
      %37 = sbr.rel (0) target = $region13
    $region12: #{mlp_forward.1} parent=1 // pred_region
      _
    $region13: #{mlp_forward.1} parent=1 // pred_fallthru
      _
    // Predicated region
    $region14: #{mlp_forward.1} parent=1 // pred_check
      _
    $region15: #{mlp_forward.1} parent=1 // pred_check_branch
      %39 = sbr.rel (0) target = $region17
    $region16: #{mlp_forward.1} parent=1 // pred_region
      %s41 = ssub.s32 16384, 16384
      %42 = vsyncadd [#allocation6], %s41
      %s43 = sshll.u32 [#allocation5], 4
      %s44 = int_to_ptr.vmem [resolvable:$true] %s43
      %49 = dma.hbm_to_vmem [thread:$0]  %s3, 16384, %s44, [#allocation6], 256, 256, 16
    $region17: #{mlp_forward.1} parent=1 // pred_fallthru
      _
    // Predicated region
    $region18: #{mlp_forward.1} parent=1 // pred_check
      _
    $region19: #{mlp_forward.1} parent=1 // pred_check_branch
      %51 = sbr.rel (0) target = $region21
    $region20: #{mlp_forward.1} parent=1 // pred_region
      _
    $region21: #{mlp_forward.1} parent=1 // pred_fallthru
      _
    // Predicated region
    $region22: #{mlp_forward.1} parent=1 // pred_check
      _
    $region23: #{mlp_forward.1} parent=1 // pred_check_branch
      %53 = sbr.rel (0) target = $region25
    $region24: #{mlp_forward.1} parent=1 // pred_region
      %s55 = ssub.s32 8192, 8192
      %56 = vsyncadd [#allocation6], %s55
      %s57 = sshll.u32 [#allocation7], 4
      %s58 = int_to_ptr.vmem [resolvable:$true] %s57
      %63 = dma.hbm_to_vmem [thread:$0]  %s5, 8192, %s58, [#allocation6], 256, 256, 16
    $region25: #{mlp_forward.1} parent=1 // pred_fallthru
      _
    // Predicated region
    $region26: #{mlp_forward.1} parent=1 // pred_check
      _
    $region27: #{mlp_forward.1} parent=1 // pred_check_branch
      %65 = sbr.rel (0) target = $region29
    $region28: #{mlp_forward.1} parent=1 // pred_region
      _
    $region29: #{mlp_forward.1} parent=1 // pred_fallthru
      _
    // Predicated region
    $region30: #{mlp_forward.1} parent=1 // pred_check
      _
    $region31: #{mlp_forward.1} parent=1 // pred_check_branch
      %67 = sbr.rel (0) target = $region33
    $region32: #{mlp_forward.1} parent=1 // pred_region
      %s69 = ssub.s32 8192, 8192
      %70 = vsyncadd [#allocation9], %s69
      %s71 = sshll.u32 [#allocation8], 4
      %s72 = int_to_ptr.vmem [resolvable:$true] %s71
      %77 = dma.hbm_to_vmem [thread:$0]  %s7, 8192, %s72, [#allocation9], 256, 256, 16
    $region33: #{mlp_forward.1} parent=1 // pred_fallthru
      _
    // Predicated region
    $region34: #{mlp_forward.1} parent=1 // pred_check
      _
    $region35: #{mlp_forward.1} parent=1 // pred_check_branch
      %79 = sbr.rel (0) target = $region37
    $region36: #{mlp_forward.1} parent=1 // pred_region
      _
    $region37: #{mlp_forward.1} parent=1 // pred_fallthru
      _
    // Predicated region
    $region38: #{mlp_forward.1} parent=1 // pred_check
      _
    $region39: #{mlp_forward.1} parent=1 // pred_check_branch
      %81 = sbr.rel (0) target = $region41
    $region40: #{mlp_forward.1} parent=1 // pred_region
      %s83 = ssub.s32 8192, 8192
      %84 = vsyncadd [#allocation9], %s83
      %s85 = sshll.u32 [#allocation10], 4
      %s86 = int_to_ptr.vmem [resolvable:$true] %s85
      %91 = dma.hbm_to_vmem [thread:$0]  %s9, 8192, %s86, [#allocation9], 256, 256, 16
    $region41: #{mlp_forward.1} parent=1 // pred_fallthru
      _
    // Predicated region
    $region42: #{mlp_forward.1} parent=1 // pred_check
      _
    $region43: #{mlp_forward.1} parent=1 // pred_check_branch
      %93 = sbr.rel (0) target = $region45
    $region44: #{mlp_forward.1} parent=1 // pred_region
      _
    $region45: #{mlp_forward.1} parent=1 // pred_fallthru
      _
    // Predicated region
    $region46: #{mlp_forward.1} parent=1 // pred_check
      _
    $region47: #{mlp_forward.1} parent=1 // pred_check_branch
      %95 = sbr.rel (0) target = $region49
    $region48: #{mlp_forward.1} parent=1 // pred_region
      %96 = dma.done [#allocation3], 8192
    $region49: #{mlp_forward.1} parent=1 // pred_fallthru
      _
    // Predicated region
    $region50: #{mlp_forward.1} parent=1 // pred_check
      _
    $region51: #{mlp_forward.1} parent=1 // pred_check_branch
      %98 = sbr.rel (0) target = $region53
    $region52: #{mlp_forward.1} parent=1 // pred_region
      %99 = dma.done [#allocation6], 16384
    $region53: #{mlp_forward.1} parent=1 // pred_fallthru
      _
    // Predicated region
    $region54: #{mlp_forward.1} parent=1 // pred_check
      _
    $region55: #{mlp_forward.1} parent=1 // pred_check_branch
      %101 = sbr.rel (0) target = $region57
    $region56: #{mlp_forward.1} parent=1 // pred_region
      %102 = dma.done [#allocation6], 8192
    $region57: #{mlp_forward.1} parent=1 // pred_fallthru
      _
    // Predicated region
    $region58: #{mlp_forward.1} parent=1 // pred_check
      _
    $region59: #{mlp_forward.1} parent=1 // pred_check_branch
      %104 = sbr.rel (0) target = $region61
    $region60: #{mlp_forward.1} parent=1 // pred_region
      %105 = dma.done [#allocation9], 8192
    $region61: #{mlp_forward.1} parent=1 // pred_fallthru
      _
    // Predicated region
    $region62: #{mlp_forward.1} parent=1 // pred_check
      _
    $region63: #{mlp_forward.1} parent=1 // pred_check_branch
      %107 = sbr.rel (0) target = $region65
    $region64: #{mlp_forward.1} parent=1 // pred_region
      %108 = dma.done [#allocation9], 8192
    $region65: #{mlp_forward.1} parent=1 // pred_fallthru
      _
    %v109 = vld [vmem:[%s0] sm:$0xff]
    %v110 = vld [vmem:[#allocation2] sm:$0xff]
    %v111 = vld [vmem:[#allocation2 + $0x8] sm:$0xff]
    %v112 = vld [vmem:[#allocation2 + $0x10] sm:$0xff]
    %v113 = vld [vmem:[#allocation2 + $0x18] sm:$0xff]
    %v114 = vld [vmem:[#allocation2 + $0x20] sm:$0xff]
    %v115 = vld [vmem:[#allocation2 + $0x28] sm:$0xff]
    %v116 = vld [vmem:[#allocation2 + $0x30] sm:$0xff]
    %v117 = vld [vmem:[#allocation2 + $0x38] sm:$0xff]
    %v118 = vld [vmem:[#allocation2 + $0x40] sm:$0xff]
    %v119 = vld [vmem:[#allocation2 + $0x48] sm:$0xff]
    %v120 = vld [vmem:[#allocation2 + $0x50] sm:$0xff]
    %v121 = vld [vmem:[#allocation2 + $0x58] sm:$0xff]
    %v122 = vld [vmem:[#allocation2 + $0x60] sm:$0xff]
    %v123 = vld [vmem:[#allocation2 + $0x68] sm:$0xff]
    %v124 = vld [vmem:[#allocation2 + $0x70] sm:$0xff]
    %v125 = vld [vmem:[#allocation2 + $0x78] sm:$0xff]
    %v126 = vld [vmem:[#allocation2 + $0x80] sm:$0xff]
    %v127 = vld [vmem:[#allocation2 + $0x88] sm:$0xff]
    %v128 = vld [vmem:[#allocation2 + $0x90] sm:$0xff]
    %v129 = vld [vmem:[#allocation2 + $0x98] sm:$0xff]
    %v130 = vld [vmem:[#allocation2 + $0xa0] sm:$0xff]
    %v131 = vld [vmem:[#allocation2 + $0xa8] sm:$0xff]
    %v132 = vld [vmem:[#allocation2 + $0xb0] sm:$0xff]
    %v133 = vld [vmem:[#allocation2 + $0xb8] sm:$0xff]
    %v134 = vld [vmem:[#allocation2 + $0xc0] sm:$0xff]
    %v135 = vld [vmem:[#allocation2 + $0xc8] sm:$0xff]
    %v136 = vld [vmem:[#allocation2 + $0xd0] sm:$0xff]
    %v137 = vld [vmem:[#allocation2 + $0xd8] sm:$0xff]
    %v138 = vld [vmem:[#allocation2 + $0xe0] sm:$0xff]
    %v139 = vld [vmem:[#allocation2 + $0xe8] sm:$0xff]
    %v140 = vld [vmem:[#allocation2 + $0xf0] sm:$0xff]
    %v141 = vld [vmem:[#allocation2 + $0xf8] sm:$0xff]
    %v142 = vld [vmem:[#allocation2 + $0x100] sm:$0xff]
    %v143 = vld [vmem:[#allocation2 + $0x108] sm:$0xff]
    %v144 = vld [vmem:[#allocation2 + $0x110] sm:$0xff]
    %v145 = vld [vmem:[#allocation2 + $0x118] sm:$0xff]
    %v146 = vld [vmem:[#allocation2 + $0x120] sm:$0xff]
    %v147 = vld [vmem:[#allocation2 + $0x128] sm:$0xff]
    %v148 = vld [vmem:[#allocation2 + $0x130] sm:$0xff]
    %v149 = vld [vmem:[#allocation2 + $0x138] sm:$0xff]
    %v150 = vld [vmem:[#allocation2 + $0x140] sm:$0xff]
    %v151 = vld [vmem:[#allocation2 + $0x148] sm:$0xff]
    %v152 = vld [vmem:[#allocation2 + $0x150] sm:$0xff]
    %v153 = vld [vmem:[#allocation2 + $0x158] sm:$0xff]
    %v154 = vld [vmem:[#allocation2 + $0x160] sm:$0xff]
    %v155 = vld [vmem:[#allocation2 + $0x168] sm:$0xff]
    %v156 = vld [vmem:[#allocation2 + $0x170] sm:$0xff]
    %v157 = vld [vmem:[#allocation2 + $0x178] sm:$0xff]
    %v158 = vld [vmem:[#allocation2 + $0x180] sm:$0xff]
    %v159 = vld [vmem:[#allocation2 + $0x188] sm:$0xff]
    %v160 = vld [vmem:[#allocation2 + $0x190] sm:$0xff]
    %v161 = vld [vmem:[#allocation2 + $0x198] sm:$0xff]
    %v162 = vld [vmem:[#allocation2 + $0x1a0] sm:$0xff]
    %v163 = vld [vmem:[#allocation2 + $0x1a8] sm:$0xff]
    %v164 = vld [vmem:[#allocation2 + $0x1b0] sm:$0xff]
    %v165 = vld [vmem:[#allocation2 + $0x1b8] sm:$0xff]
    %v166 = vld [vmem:[#allocation2 + $0x1c0] sm:$0xff]
    %v167 = vld [vmem:[#allocation2 + $0x1c8] sm:$0xff]
    %v168 = vld [vmem:[#allocation2 + $0x1d0] sm:$0xff]
    %v169 = vld [vmem:[#allocation2 + $0x1d8] sm:$0xff]
    %v170 = vld [vmem:[#allocation2 + $0x1e0] sm:$0xff]
    %v171 = vld [vmem:[#allocation2 + $0x1e8] sm:$0xff]
    %v172 = vld [vmem:[#allocation2 + $0x1f0] sm:$0xff]
    %v173 = vld [vmem:[#allocation2 + $0x1f8] sm:$0xff]
    %v174 = vld [vmem:[%s2] sm:$0xf]
    %v176 = vlaneseq
    %v177 = vshrl.u32 %v176, 7
    %v178 = vsub.s32 0, %v177
    %v179 = vrot.slane %v174, %v178
    %v180 = vlaneseq
    %v181 = vshrl.u32 %v180, 7
    %v182 = vsub.s32 1, %v181
    %v183 = vrot.slane %v174, %v182
    %v184 = vlaneseq
    %v185 = vshrl.u32 %v184, 7
    %v186 = vsub.s32 2, %v185
    %v187 = vrot.slane %v174, %v186
    %v188 = vlaneseq
    %v189 = vshrl.u32 %v188, 7
    %v190 = vsub.s32 3, %v189
    %v191 = vrot.slane %v174, %v190
    %196 = vmatprep.subr.mxu0 %v111
    %197 = vmatpush1.msra.mxu0 %v110
    %198 = vmatprep.subr.mxu0 %v115
    %199 = vmatpush1.msra.mxu0 %v114
    %200 = vmatprep.subr.mxu0 %v119
    %201 = vmatpush1.msra.mxu0 %v118
    %202 = vmatprep.subr.mxu0 %v123
    %203 = vmatpush1.msra.mxu0 %v122
    %204 = vmatprep.subr.mxu0 %v127
    %205 = vmatpush1.msra.mxu0 %v126
    %206 = vmatprep.subr.mxu0 %v131
    %207 = vmatpush1.msra.mxu0 %v130
    %208 = vmatprep.subr.mxu0 %v135
    %209 = vmatpush1.msra.mxu0 %v134
    %210 = vmatprep.subr.mxu0 %v139
    %211 = vmatpush1.msra.mxu0 %v138
    %212 = vmatprep.subr.mxu0 %v143
    %213 = vmatpush1.msra.mxu0 %v142
    %214 = vmatprep.subr.mxu0 %v147
    %215 = vmatpush1.msra.mxu0 %v146
    %216 = vmatprep.subr.mxu0 %v151
    %217 = vmatpush1.msra.mxu0 %v150
    %218 = vmatprep.subr.mxu0 %v155
    %219 = vmatpush1.msra.mxu0 %v154
    %220 = vmatprep.subr.mxu0 %v159
    %221 = vmatpush1.msra.mxu0 %v158
    %222 = vmatprep.subr.mxu0 %v163
    %223 = vmatpush1.msra.mxu0 %v162
    %224 = vmatprep.subr.mxu0 %v167
    %225 = vmatpush1.msra.mxu0 %v166
    %226 = vmatprep.subr.mxu0 %v171
    %227 = vmatpush1.msra.mxu0 %v170
    %228 = vmatprep.subr.mxu0 0.0
    %229 = vmatpush1.msra.mxu0 0.0
    %230 = vmatprep.subr.mxu0 0.0
    %231 = vmatpush1.msra.mxu0 0.0
    %232 = vmatprep.subr.mxu0 0.0
    %233 = vmatpush1.msra.mxu0 0.0
    %234 = vmatprep.subr.mxu0 0.0
    %235 = vmatpush1.msra.mxu0 0.0
    %236 = vmatprep.subr.mxu0 0.0
    %237 = vmatpush1.msra.mxu0 0.0
    %238 = vmatprep.subr.mxu0 0.0
    %239 = vmatpush1.msra.mxu0 0.0
    %240 = vmatprep.subr.mxu0 0.0
    %241 = vmatpush1.msra.mxu0 0.0
    %242 = vmatprep.subr.mxu0 0.0
    %243 = vmatpush1.msra.mxu0 0.0
    %244 = vmatprep.subr.mxu0 0.0
    %245 = vmatpush1.msra.mxu0 0.0
    %246 = vmatprep.subr.mxu0 0.0
    %247 = vmatpush1.msra.mxu0 0.0
    %248 = vmatprep.subr.mxu0 0.0
    %249 = vmatpush1.msra.mxu0 0.0
    %250 = vmatprep.subr.mxu0 0.0
    %251 = vmatpush1.msra.mxu0 0.0
    %252 = vmatprep.subr.mxu0 0.0
    %253 = vmatpush1.msra.mxu0 0.0
    %254 = vmatprep.subr.mxu0 0.0
    %255 = vmatpush1.msra.mxu0 0.0
    %256 = vmatprep.subr.mxu0 0.0
    %257 = vmatpush1.msra.mxu0 0.0
    %258 = vmatprep.subr.mxu0 0.0
    %259 = vmatpush1.msra.mxu0 0.0
    %260 = vmatprep.mubr.f32.mxu0 0.0
    %261 = vmatmul.mubr.f32.gmra.mrb[0].mxu0 %v109
    %v262 = vpop.f32.mrb[0].mxu0
    %v263 = vadd.f32 %v179, %v262
    %v264 = vpop.f32.mrb[0].mxu0
    %v265 = vadd.f32 %v183, %v264
    %266 = vdwg.mxu0
    %267 = vmatprep.subr.mxu0 %v113
    %268 = vmatpush1.msra.mxu0 %v112
    %269 = vmatprep.subr.mxu0 %v117
    %270 = vmatpush1.msra.mxu0 %v116
    %271 = vmatprep.subr.mxu0 %v121
    %272 = vmatpush1.msra.mxu0 %v120
    %273 = vmatprep.subr.mxu0 %v125
    %274 = vmatpush1.msra.mxu0 %v124
    %275 = vmatprep.subr.mxu0 %v129
    %276 = vmatpush1.msra.mxu0 %v128
    %277 = vmatprep.subr.mxu0 %v133
    %278 = vmatpush1.msra.mxu0 %v132
    %279 = vmatprep.subr.mxu0 %v137
    %280 = vmatpush1.msra.mxu0 %v136
    %281 = vmatprep.subr.mxu0 %v141
    %282 = vmatpush1.msra.mxu0 %v140
    %283 = vmatprep.subr.mxu0 %v145
    %284 = vmatpush1.msra.mxu0 %v144
    %285 = vmatprep.subr.mxu0 %v149
    %286 = vmatpush1.msra.mxu0 %v148
    %287 = vmatprep.subr.mxu0 %v153
    %288 = vmatpush1.msra.mxu0 %v152
    %289 = vmatprep.subr.mxu0 %v157
    %290 = vmatpush1.msra.mxu0 %v156
    %291 = vmatprep.subr.mxu0 %v161
    %292 = vmatpush1.msra.mxu0 %v160
    %293 = vmatprep.subr.mxu0 %v165
    %294 = vmatpush1.msra.mxu0 %v164
    %295 = vmatprep.subr.mxu0 %v169
    %296 = vmatpush1.msra.mxu0 %v168
    %297 = vmatprep.subr.mxu0 %v173
    %298 = vmatpush1.msra.mxu0 %v172
    %299 = vmatprep.subr.mxu0 0.0
    %300 = vmatpush1.msra.mxu0 0.0
    %301 = vmatprep.subr.mxu0 0.0
    %302 = vmatpush1.msra.mxu0 0.0
    %303 = vmatprep.subr.mxu0 0.0
    %304 = vmatpush1.msra.mxu0 0.0
    %305 = vmatprep.subr.mxu0 0.0
    %306 = vmatpush1.msra.mxu0 0.0
    %307 = vmatprep.subr.mxu0 0.0
    %308 = vmatpush1.msra.mxu0 0.0
    %309 = vmatprep.subr.mxu0 0.0
    %310 = vmatpush1.msra.mxu0 0.0
    %311 = vmatprep.subr.mxu0 0.0
    %312 = vmatpush1.msra.mxu0 0.0
    %313 = vmatprep.subr.mxu0 0.0
    %314 = vmatpush1.msra.mxu0 0.0
    %315 = vmatprep.subr.mxu0 0.0
    %316 = vmatpush1.msra.mxu0 0.0
    %317 = vmatprep.subr.mxu0 0.0
    %318 = vmatpush1.msra.mxu0 0.0
    %319 = vmatprep.subr.mxu0 0.0
    %320 = vmatpush1.msra.mxu0 0.0
    %321 = vmatprep.subr.mxu0 0.0
    %322 = vmatpush1.msra.mxu0 0.0
    %323 = vmatprep.subr.mxu0 0.0
    %324 = vmatpush1.msra.mxu0 0.0
    %325 = vmatprep.subr.mxu0 0.0
    %326 = vmatpush1.msra.mxu0 0.0
    %327 = vmatprep.subr.mxu0 0.0
    %328 = vmatpush1.msra.mxu0 0.0
    %329 = vmatprep.subr.mxu0 0.0
    %330 = vmatpush1.msra.mxu0 0.0
    %331 = vmatprep.mubr.f32.mxu0 0.0
    %332 = vmatmul.mubr.f32.gmra.mrb[0].mxu0 %v109
    %v333 = vpop.f32.mrb[0].mxu0
    %v334 = vadd.f32 %v187, %v333
    %v335 = vpop.f32.mrb[0].mxu0
    %v336 = vadd.f32 %v191, %v335
    %337 = vdwg.mxu0
    %v338 = vmax.f32 %v263, 0.0
    %v339 = vmax.f32 %v265, 0.0
    %v340 = vmax.f32 %v334, 0.0
    %v341 = vmax.f32 %v336, 0.0
    %v342 = vld [vmem:[#allocation5] sm:$0xff]
    %v343 = vld [vmem:[#allocation5 + $0x8] sm:$0xff]
    %v344 = vld [vmem:[#allocation5 + $0x10] sm:$0xff]
    %v345 = vld [vmem:[#allocation5 + $0x18] sm:$0xff]
    %v346 = vld [vmem:[#allocation5 + $0x20] sm:$0xff]
    %v347 = vld [vmem:[#allocation5 + $0x28] sm:$0xff]
    %v348 = vld [vmem:[#allocation5 + $0x30] sm:$0xff]
    %v349 = vld [vmem:[#allocation5 + $0x38] sm:$0xff]
    %v350 = vld [vmem:[#allocation5 + $0x40] sm:$0xff]
    %v351 = vld [vmem:[#allocation5 + $0x48] sm:$0xff]
    %v352 = vld [vmem:[#allocation5 + $0x50] sm:$0xff]
    %v353 = vld [vmem:[#allocation5 + $0x58] sm:$0xff]
    %v354 = vld [vmem:[#allocation5 + $0x60] sm:$0xff]
    %v355 = vld [vmem:[#allocation5 + $0x68] sm:$0xff]
    %v356 = vld [vmem:[#allocation5 + $0x70] sm:$0xff]
    %v357 = vld [vmem:[#allocation5 + $0x78] sm:$0xff]
    %v358 = vld [vmem:[#allocation5 + $0x80] sm:$0xff]
    %v359 = vld [vmem:[#allocation5 + $0x88] sm:$0xff]
    %v360 = vld [vmem:[#allocation5 + $0x90] sm:$0xff]
    %v361 = vld [vmem:[#allocation5 + $0x98] sm:$0xff]
    %v362 = vld [vmem:[#allocation5 + $0xa0] sm:$0xff]
    %v363 = vld [vmem:[#allocation5 + $0xa8] sm:$0xff]
    %v364 = vld [vmem:[#allocation5 + $0xb0] sm:$0xff]
    %v365 = vld [vmem:[#allocation5 + $0xb8] sm:$0xff]
    %v366 = vld [vmem:[#allocation5 + $0xc0] sm:$0xff]
    %v367 = vld [vmem:[#allocation5 + $0xc8] sm:$0xff]
    %v368 = vld [vmem:[#allocation5 + $0xd0] sm:$0xff]
    %v369 = vld [vmem:[#allocation5 + $0xd8] sm:$0xff]
    %v370 = vld [vmem:[#allocation5 + $0xe0] sm:$0xff]
    %v371 = vld [vmem:[#allocation5 + $0xe8] sm:$0xff]
    %v372 = vld [vmem:[#allocation5 + $0xf0] sm:$0xff]
    %v373 = vld [vmem:[#allocation5 + $0xf8] sm:$0xff]
    %v374 = vld [vmem:[#allocation5 + $0x100] sm:$0xff]
    %v375 = vld [vmem:[#allocation5 + $0x108] sm:$0xff]
    %v376 = vld [vmem:[#allocation5 + $0x110] sm:$0xff]
    %v377 = vld [vmem:[#allocation5 + $0x118] sm:$0xff]
    %v378 = vld [vmem:[#allocation5 + $0x120] sm:$0xff]
    %v379 = vld [vmem:[#allocation5 + $0x128] sm:$0xff]
    %v380 = vld [vmem:[#allocation5 + $0x130] sm:$0xff]
    %v381 = vld [vmem:[#allocation5 + $0x138] sm:$0xff]
    %v382 = vld [vmem:[#allocation5 + $0x140] sm:$0xff]
    %v383 = vld [vmem:[#allocation5 + $0x148] sm:$0xff]
    %v384 = vld [vmem:[#allocation5 + $0x150] sm:$0xff]
    %v385 = vld [vmem:[#allocation5 + $0x158] sm:$0xff]
    %v386 = vld [vmem:[#allocation5 + $0x160] sm:$0xff]
    %v387 = vld [vmem:[#allocation5 + $0x168] sm:$0xff]
    %v388 = vld [vmem:[#allocation5 + $0x170] sm:$0xff]
    %v389 = vld [vmem:[#allocation5 + $0x178] sm:$0xff]
    %v390 = vld [vmem:[#allocation5 + $0x180] sm:$0xff]
    %v391 = vld [vmem:[#allocation5 + $0x188] sm:$0xff]
    %v392 = vld [vmem:[#allocation5 + $0x190] sm:$0xff]
    %v393 = vld [vmem:[#allocation5 + $0x198] sm:$0xff]
    %v394 = vld [vmem:[#allocation5 + $0x1a0] sm:$0xff]
    %v395 = vld [vmem:[#allocation5 + $0x1a8] sm:$0xff]
    %v396 = vld [vmem:[#allocation5 + $0x1b0] sm:$0xff]
    %v397 = vld [vmem:[#allocation5 + $0x1b8] sm:$0xff]
    %v398 = vld [vmem:[#allocation5 + $0x1c0] sm:$0xff]
    %v399 = vld [vmem:[#allocation5 + $0x1c8] sm:$0xff]
    %v400 = vld [vmem:[#allocation5 + $0x1d0] sm:$0xff]
    %v401 = vld [vmem:[#allocation5 + $0x1d8] sm:$0xff]
    %v402 = vld [vmem:[#allocation5 + $0x1e0] sm:$0xff]
    %v403 = vld [vmem:[#allocation5 + $0x1e8] sm:$0xff]
    %v404 = vld [vmem:[#allocation5 + $0x1f0] sm:$0xff]
    %v405 = vld [vmem:[#allocation5 + $0x1f8] sm:$0xff]
    %v406 = vld [vmem:[#allocation5 + $0x200] sm:$0xff]
    %v407 = vld [vmem:[#allocation5 + $0x208] sm:$0xff]
    %v408 = vld [vmem:[#allocation5 + $0x210] sm:$0xff]
    %v409 = vld [vmem:[#allocation5 + $0x218] sm:$0xff]
    %v410 = vld [vmem:[#allocation5 + $0x220] sm:$0xff]
    %v411 = vld [vmem:[#allocation5 + $0x228] sm:$0xff]
    %v412 = vld [vmem:[#allocation5 + $0x230] sm:$0xff]
    %v413 = vld [vmem:[#allocation5 + $0x238] sm:$0xff]
    %v414 = vld [vmem:[#allocation5 + $0x240] sm:$0xff]
    %v415 = vld [vmem:[#allocation5 + $0x248] sm:$0xff]
    %v416 = vld [vmem:[#allocation5 + $0x250] sm:$0xff]
    %v417 = vld [vmem:[#allocation5 + $0x258] sm:$0xff]
    %v418 = vld [vmem:[#allocation5 + $0x260] sm:$0xff]
    %v419 = vld [vmem:[#allocation5 + $0x268] sm:$0xff]
    %v420 = vld [vmem:[#allocation5 + $0x270] sm:$0xff]
    %v421 = vld [vmem:[#allocation5 + $0x278] sm:$0xff]
    %v422 = vld [vmem:[#allocation5 + $0x280] sm:$0xff]
    %v423 = vld [vmem:[#allocation5 + $0x288] sm:$0xff]
    %v424 = vld [vmem:[#allocation5 + $0x290] sm:$0xff]
    %v425 = vld [vmem:[#allocation5 + $0x298] sm:$0xff]
    %v426 = vld [vmem:[#allocation5 + $0x2a0] sm:$0xff]
    %v427 = vld [vmem:[#allocation5 + $0x2a8] sm:$0xff]
    %v428 = vld [vmem:[#allocation5 + $0x2b0] sm:$0xff]
    %v429 = vld [vmem:[#allocation5 + $0x2b8] sm:$0xff]
    %v430 = vld [vmem:[#allocation5 + $0x2c0] sm:$0xff]
    %v431 = vld [vmem:[#allocation5 + $0x2c8] sm:$0xff]
    %v432 = vld [vmem:[#allocation5 + $0x2d0] sm:$0xff]
    %v433 = vld [vmem:[#allocation5 + $0x2d8] sm:$0xff]
    %v434 = vld [vmem:[#allocation5 + $0x2e0] sm:$0xff]
    %v435 = vld [vmem:[#allocation5 + $0x2e8] sm:$0xff]
    %v436 = vld [vmem:[#allocation5 + $0x2f0] sm:$0xff]
    %v437 = vld [vmem:[#allocation5 + $0x2f8] sm:$0xff]
    %v438 = vld [vmem:[#allocation5 + $0x300] sm:$0xff]
    %v439 = vld [vmem:[#allocation5 + $0x308] sm:$0xff]
    %v440 = vld [vmem:[#allocation5 + $0x310] sm:$0xff]
    %v441 = vld [vmem:[#allocation5 + $0x318] sm:$0xff]
    %v442 = vld [vmem:[#allocation5 + $0x320] sm:$0xff]
    %v443 = vld [vmem:[#allocation5 + $0x328] sm:$0xff]
    %v444 = vld [vmem:[#allocation5 + $0x330] sm:$0xff]
    %v445 = vld [vmem:[#allocation5 + $0x338] sm:$0xff]
    %v446 = vld [vmem:[#allocation5 + $0x340] sm:$0xff]
    %v447 = vld [vmem:[#allocation5 + $0x348] sm:$0xff]
    %v448 = vld [vmem:[#allocation5 + $0x350] sm:$0xff]
    %v449 = vld [vmem:[#allocation5 + $0x358] sm:$0xff]
    %v450 = vld [vmem:[#allocation5 + $0x360] sm:$0xff]
    %v451 = vld [vmem:[#allocation5 + $0x368] sm:$0xff]
    %v452 = vld [vmem:[#allocation5 + $0x370] sm:$0xff]
    %v453 = vld [vmem:[#allocation5 + $0x378] sm:$0xff]
    %v454 = vld [vmem:[#allocation5 + $0x380] sm:$0xff]
    %v455 = vld [vmem:[#allocation5 + $0x388] sm:$0xff]
    %v456 = vld [vmem:[#allocation5 + $0x390] sm:$0xff]
    %v457 = vld [vmem:[#allocation5 + $0x398] sm:$0xff]
    %v458 = vld [vmem:[#allocation5 + $0x3a0] sm:$0xff]
    %v459 = vld [vmem:[#allocation5 + $0x3a8] sm:$0xff]
    %v460 = vld [vmem:[#allocation5 + $0x3b0] sm:$0xff]
    %v461 = vld [vmem:[#allocation5 + $0x3b8] sm:$0xff]
    %v462 = vld [vmem:[#allocation5 + $0x3c0] sm:$0xff]
    %v463 = vld [vmem:[#allocation5 + $0x3c8] sm:$0xff]
    %v464 = vld [vmem:[#allocation5 + $0x3d0] sm:$0xff]
    %v465 = vld [vmem:[#allocation5 + $0x3d8] sm:$0xff]
    %v466 = vld [vmem:[#allocation5 + $0x3e0] sm:$0xff]
    %v467 = vld [vmem:[#allocation5 + $0x3e8] sm:$0xff]
    %v468 = vld [vmem:[#allocation5 + $0x3f0] sm:$0xff]
    %v469 = vld [vmem:[#allocation5 + $0x3f8] sm:$0xff]
    %v470 = vld [vmem:[%s4] sm:$0x3]
    %v472 = vlaneseq
    %v473 = vshrl.u32 %v472, 7
    %v474 = vsub.s32 0, %v473
    %v475 = vrot.slane %v470, %v474
    %v476 = vlaneseq
    %v477 = vshrl.u32 %v476, 7
    %v478 = vsub.s32 1, %v477
    %v479 = vrot.slane %v470, %v478
    %482 = vmatprep.subr.mxu0 %v343
    %483 = vmatpush1.msra.mxu0 %v342
    %484 = vmatprep.subr.mxu0 %v345
    %485 = vmatpush1.msra.mxu0 %v344
    %486 = vmatprep.subr.mxu0 %v347
    %487 = vmatpush1.msra.mxu0 %v346
    %488 = vmatprep.subr.mxu0 %v349
    %489 = vmatpush1.msra.mxu0 %v348
    %490 = vmatprep.subr.mxu0 %v351
    %491 = vmatpush1.msra.mxu0 %v350
    %492 = vmatprep.subr.mxu0 %v353
    %493 = vmatpush1.msra.mxu0 %v352
    %494 = vmatprep.subr.mxu0 %v355
    %495 = vmatpush1.msra.mxu0 %v354
    %496 = vmatprep.subr.mxu0 %v357
    %497 = vmatpush1.msra.mxu0 %v356
    %498 = vmatprep.subr.mxu0 %v359
    %499 = vmatpush1.msra.mxu0 %v358
    %500 = vmatprep.subr.mxu0 %v361
    %501 = vmatpush1.msra.mxu0 %v360
    %502 = vmatprep.subr.mxu0 %v363
    %503 = vmatpush1.msra.mxu0 %v362
    %504 = vmatprep.subr.mxu0 %v365
    %505 = vmatpush1.msra.mxu0 %v364
    %506 = vmatprep.subr.mxu0 %v367
    %507 = vmatpush1.msra.mxu0 %v366
    %508 = vmatprep.subr.mxu0 %v369
    %509 = vmatpush1.msra.mxu0 %v368
    %510 = vmatprep.subr.mxu0 %v371
    %511 = vmatpush1.msra.mxu0 %v370
    %512 = vmatprep.subr.mxu0 %v373
    %513 = vmatpush1.msra.mxu0 %v372
    %514 = vmatprep.subr.mxu0 %v375
    %515 = vmatpush1.msra.mxu0 %v374
    %516 = vmatprep.subr.mxu0 %v377
    %517 = vmatpush1.msra.mxu0 %v376
    %518 = vmatprep.subr.mxu0 %v379
    %519 = vmatpush1.msra.mxu0 %v378
    %520 = vmatprep.subr.mxu0 %v381
    %521 = vmatpush1.msra.mxu0 %v380
    %522 = vmatprep.subr.mxu0 %v383
    %523 = vmatpush1.msra.mxu0 %v382
    %524 = vmatprep.subr.mxu0 %v385
    %525 = vmatpush1.msra.mxu0 %v384
    %526 = vmatprep.subr.mxu0 %v387
    %527 = vmatpush1.msra.mxu0 %v386
    %528 = vmatprep.subr.mxu0 %v389
    %529 = vmatpush1.msra.mxu0 %v388
    %530 = vmatprep.subr.mxu0 %v391
    %531 = vmatpush1.msra.mxu0 %v390
    %532 = vmatprep.subr.mxu0 %v393
    %533 = vmatpush1.msra.mxu0 %v392
    %534 = vmatprep.subr.mxu0 %v395
    %535 = vmatpush1.msra.mxu0 %v394
    %536 = vmatprep.subr.mxu0 %v397
    %537 = vmatpush1.msra.mxu0 %v396
    %538 = vmatprep.subr.mxu0 %v399
    %539 = vmatpush1.msra.mxu0 %v398
    %540 = vmatprep.subr.mxu0 %v401
    %541 = vmatpush1.msra.mxu0 %v400
    %542 = vmatprep.subr.mxu0 %v403
    %543 = vmatpush1.msra.mxu0 %v402
    %544 = vmatprep.subr.mxu0 %v405
    %545 = vmatpush1.msra.mxu0 %v404
    %546 = vmatprep.mubr.f32.mxu0 %v339
    %547 = vmatmul.mubr.f32.gmra.mrb[0].mxu0 %v338
    %v548 = vpop.f32.mrb[0].mxu0
    %v549 = vadd.f32 %v475, %v548
    %v550 = vpop.f32.mrb[0].mxu0
    %v551 = vadd.f32 %v479, %v550
    %552 = vdwg.mxu0
    %553 = vmatprep.subr.mxu0 %v407
    %554 = vmatpush1.msra.mxu0 %v406
    %555 = vmatprep.subr.mxu0 %v409
    %556 = vmatpush1.msra.mxu0 %v408
    %557 = vmatprep.subr.mxu0 %v411
    %558 = vmatpush1.msra.mxu0 %v410
    %559 = vmatprep.subr.mxu0 %v413
    %560 = vmatpush1.msra.mxu0 %v412
    %561 = vmatprep.subr.mxu0 %v415
    %562 = vmatpush1.msra.mxu0 %v414
    %563 = vmatprep.subr.mxu0 %v417
    %564 = vmatpush1.msra.mxu0 %v416
    %565 = vmatprep.subr.mxu0 %v419
    %566 = vmatpush1.msra.mxu0 %v418
    %567 = vmatprep.subr.mxu0 %v421
    %568 = vmatpush1.msra.mxu0 %v420
    %569 = vmatprep.subr.mxu0 %v423
    %570 = vmatpush1.msra.mxu0 %v422
    %571 = vmatprep.subr.mxu0 %v425
    %572 = vmatpush1.msra.mxu0 %v424
    %573 = vmatprep.subr.mxu0 %v427
    %574 = vmatpush1.msra.mxu0 %v426
    %575 = vmatprep.subr.mxu0 %v429
    %576 = vmatpush1.msra.mxu0 %v428
    %577 = vmatprep.subr.mxu0 %v431
    %578 = vmatpush1.msra.mxu0 %v430
    %579 = vmatprep.subr.mxu0 %v433
    %580 = vmatpush1.msra.mxu0 %v432
    %581 = vmatprep.subr.mxu0 %v435
    %582 = vmatpush1.msra.mxu0 %v434
    %583 = vmatprep.subr.mxu0 %v437
    %584 = vmatpush1.msra.mxu0 %v436
    %585 = vmatprep.subr.mxu0 %v439
    %586 = vmatpush1.msra.mxu0 %v438
    %587 = vmatprep.subr.mxu0 %v441
    %588 = vmatpush1.msra.mxu0 %v440
    %589 = vmatprep.subr.mxu0 %v443
    %590 = vmatpush1.msra.mxu0 %v442
    %591 = vmatprep.subr.mxu0 %v445
    %592 = vmatpush1.msra.mxu0 %v444
    %593 = vmatprep.subr.mxu0 %v447
    %594 = vmatpush1.msra.mxu0 %v446
    %595 = vmatprep.subr.mxu0 %v449
    %596 = vmatpush1.msra.mxu0 %v448
    %597 = vmatprep.subr.mxu0 %v451
    %598 = vmatpush1.msra.mxu0 %v450
    %599 = vmatprep.subr.mxu0 %v453
    %600 = vmatpush1.msra.mxu0 %v452
    %601 = vmatprep.subr.mxu0 %v455
    %602 = vmatpush1.msra.mxu0 %v454
    %603 = vmatprep.subr.mxu0 %v457
    %604 = vmatpush1.msra.mxu0 %v456
    %605 = vmatprep.subr.mxu0 %v459
    %606 = vmatpush1.msra.mxu0 %v458
    %607 = vmatprep.subr.mxu0 %v461
    %608 = vmatpush1.msra.mxu0 %v460
    %609 = vmatprep.subr.mxu0 %v463
    %610 = vmatpush1.msra.mxu0 %v462
    %611 = vmatprep.subr.mxu0 %v465
    %612 = vmatpush1.msra.mxu0 %v464
    %613 = vmatprep.subr.mxu0 %v467
    %614 = vmatpush1.msra.mxu0 %v466
    %615 = vmatprep.subr.mxu0 %v469
    %616 = vmatpush1.msra.mxu0 %v468
    %617 = vmatprep.mubr.f32.mxu0 %v341
    %618 = vmatmul.mubr.f32.gmra.mrb[0].mxu0 %v340
    %v619 = vpop.f32.mrb[0].mxu0
    %v620 = vadd.f32 %v549, %v619
    %v621 = vpop.f32.mrb[0].mxu0
    %v622 = vadd.f32 %v551, %v621
    %623 = vdwg.mxu0
    %v624 = vmax.f32 %v620, 0.0
    %v625 = vmax.f32 %v622, 0.0
    %v626 = vld [vmem:[#allocation7] sm:$0xff]
    %v627 = vld [vmem:[#allocation7 + $0x8] sm:$0xff]
    %v628 = vld [vmem:[#allocation7 + $0x10] sm:$0xff]
    %v629 = vld [vmem:[#allocation7 + $0x18] sm:$0xff]
    %v630 = vld [vmem:[#allocation7 + $0x20] sm:$0xff]
    %v631 = vld [vmem:[#allocation7 + $0x28] sm:$0xff]
    %v632 = vld [vmem:[#allocation7 + $0x30] sm:$0xff]
    %v633 = vld [vmem:[#allocation7 + $0x38] sm:$0xff]
    %v634 = vld [vmem:[#allocation7 + $0x40] sm:$0xff]
    %v635 = vld [vmem:[#allocation7 + $0x48] sm:$0xff]
    %v636 = vld [vmem:[#allocation7 + $0x50] sm:$0xff]
    %v637 = vld [vmem:[#allocation7 + $0x58] sm:$0xff]
    %v638 = vld [vmem:[#allocation7 + $0x60] sm:$0xff]
    %v639 = vld [vmem:[#allocation7 + $0x68] sm:$0xff]
    %v640 = vld [vmem:[#allocation7 + $0x70] sm:$0xff]
    %v641 = vld [vmem:[#allocation7 + $0x78] sm:$0xff]
    %v642 = vld [vmem:[#allocation7 + $0x80] sm:$0xff]
    %v643 = vld [vmem:[#allocation7 + $0x88] sm:$0xff]
    %v644 = vld [vmem:[#allocation7 + $0x90] sm:$0xff]
    %v645 = vld [vmem:[#allocation7 + $0x98] sm:$0xff]
    %v646 = vld [vmem:[#allocation7 + $0xa0] sm:$0xff]
    %v647 = vld [vmem:[#allocation7 + $0xa8] sm:$0xff]
    %v648 = vld [vmem:[#allocation7 + $0xb0] sm:$0xff]
    %v649 = vld [vmem:[#allocation7 + $0xb8] sm:$0xff]
    %v650 = vld [vmem:[#allocation7 + $0xc0] sm:$0xff]
    %v651 = vld [vmem:[#allocation7 + $0xc8] sm:$0xff]
    %v652 = vld [vmem:[#allocation7 + $0xd0] sm:$0xff]
    %v653 = vld [vmem:[#allocation7 + $0xd8] sm:$0xff]
    %v654 = vld [vmem:[#allocation7 + $0xe0] sm:$0xff]
    %v655 = vld [vmem:[#allocation7 + $0xe8] sm:$0xff]
    %v656 = vld [vmem:[#allocation7 + $0xf0] sm:$0xff]
    %v657 = vld [vmem:[#allocation7 + $0xf8] sm:$0xff]
    %v658 = vld [vmem:[#allocation7 + $0x100] sm:$0xff]
    %v659 = vld [vmem:[#allocation7 + $0x108] sm:$0xff]
    %v660 = vld [vmem:[#allocation7 + $0x110] sm:$0xff]
    %v661 = vld [vmem:[#allocation7 + $0x118] sm:$0xff]
    %v662 = vld [vmem:[#allocation7 + $0x120] sm:$0xff]
    %v663 = vld [vmem:[#allocation7 + $0x128] sm:$0xff]
    %v664 = vld [vmem:[#allocation7 + $0x130] sm:$0xff]
    %v665 = vld [vmem:[#allocation7 + $0x138] sm:$0xff]
    %v666 = vld [vmem:[#allocation7 + $0x140] sm:$0xff]
    %v667 = vld [vmem:[#allocation7 + $0x148] sm:$0xff]
    %v668 = vld [vmem:[#allocation7 + $0x150] sm:$0xff]
    %v669 = vld [vmem:[#allocation7 + $0x158] sm:$0xff]
    %v670 = vld [vmem:[#allocation7 + $0x160] sm:$0xff]
    %v671 = vld [vmem:[#allocation7 + $0x168] sm:$0xff]
    %v672 = vld [vmem:[#allocation7 + $0x170] sm:$0xff]
    %v673 = vld [vmem:[#allocation7 + $0x178] sm:$0xff]
    %v674 = vld [vmem:[#allocation7 + $0x180] sm:$0xff]
    %v675 = vld [vmem:[#allocation7 + $0x188] sm:$0xff]
    %v676 = vld [vmem:[#allocation7 + $0x190] sm:$0xff]
    %v677 = vld [vmem:[#allocation7 + $0x198] sm:$0xff]
    %v678 = vld [vmem:[#allocation7 + $0x1a0] sm:$0xff]
    %v679 = vld [vmem:[#allocation7 + $0x1a8] sm:$0xff]
    %v680 = vld [vmem:[#allocation7 + $0x1b0] sm:$0xff]
    %v681 = vld [vmem:[#allocation7 + $0x1b8] sm:$0xff]
    %v682 = vld [vmem:[#allocation7 + $0x1c0] sm:$0xff]
    %v683 = vld [vmem:[#allocation7 + $0x1c8] sm:$0xff]
    %v684 = vld [vmem:[#allocation7 + $0x1d0] sm:$0xff]
    %v685 = vld [vmem:[#allocation7 + $0x1d8] sm:$0xff]
    %v686 = vld [vmem:[#allocation7 + $0x1e0] sm:$0xff]
    %v687 = vld [vmem:[#allocation7 + $0x1e8] sm:$0xff]
    %v688 = vld [vmem:[#allocation7 + $0x1f0] sm:$0xff]
    %v689 = vld [vmem:[#allocation7 + $0x1f8] sm:$0xff]
    %v690 = vld [vmem:[%s6] sm:$0x3]
    %v692 = vlaneseq
    %v693 = vshrl.u32 %v692, 7
    %v694 = vsub.s32 0, %v693
    %v695 = vrot.slane %v690, %v694
    %v696 = vlaneseq
    %v697 = vshrl.u32 %v696, 7
    %v698 = vsub.s32 1, %v697
    %v699 = vrot.slane %v690, %v698
    %702 = vmatprep.subr.mxu0 %v627
    %703 = vmatpush1.msra.mxu0 %v626
    %704 = vmatprep.subr.mxu0 %v629
    %705 = vmatpush1.msra.mxu0 %v628
    %706 = vmatprep.subr.mxu0 %v631
    %707 = vmatpush1.msra.mxu0 %v630
    %708 = vmatprep.subr.mxu0 %v633
    %709 = vmatpush1.msra.mxu0 %v632
    %710 = vmatprep.subr.mxu0 %v635
    %711 = vmatpush1.msra.mxu0 %v634
    %712 = vmatprep.subr.mxu0 %v637
    %713 = vmatpush1.msra.mxu0 %v636
    %714 = vmatprep.subr.mxu0 %v639
    %715 = vmatpush1.msra.mxu0 %v638
    %716 = vmatprep.subr.mxu0 %v641
    %717 = vmatpush1.msra.mxu0 %v640
    %718 = vmatprep.subr.mxu0 %v643
    %719 = vmatpush1.msra.mxu0 %v642
    %720 = vmatprep.subr.mxu0 %v645
    %721 = vmatpush1.msra.mxu0 %v644
    %722 = vmatprep.subr.mxu0 %v647
    %723 = vmatpush1.msra.mxu0 %v646
    %724 = vmatprep.subr.mxu0 %v649
    %725 = vmatpush1.msra.mxu0 %v648
    %726 = vmatprep.subr.mxu0 %v651
    %727 = vmatpush1.msra.mxu0 %v650
    %728 = vmatprep.subr.mxu0 %v653
    %729 = vmatpush1.msra.mxu0 %v652
    %730 = vmatprep.subr.mxu0 %v655
    %731 = vmatpush1.msra.mxu0 %v654
    %732 = vmatprep.subr.mxu0 %v657
    %733 = vmatpush1.msra.mxu0 %v656
    %734 = vmatprep.subr.mxu0 %v659
    %735 = vmatpush1.msra.mxu0 %v658
    %736 = vmatprep.subr.mxu0 %v661
    %737 = vmatpush1.msra.mxu0 %v660
    %738 = vmatprep.subr.mxu0 %v663
    %739 = vmatpush1.msra.mxu0 %v662
    %740 = vmatprep.subr.mxu0 %v665
    %741 = vmatpush1.msra.mxu0 %v664
    %742 = vmatprep.subr.mxu0 %v667
    %743 = vmatpush1.msra.mxu0 %v666
    %744 = vmatprep.subr.mxu0 %v669
    %745 = vmatpush1.msra.mxu0 %v668
    %746 = vmatprep.subr.mxu0 %v671
    %747 = vmatpush1.msra.mxu0 %v670
    %748 = vmatprep.subr.mxu0 %v673
    %749 = vmatpush1.msra.mxu0 %v672
    %750 = vmatprep.subr.mxu0 %v675
    %751 = vmatpush1.msra.mxu0 %v674
    %752 = vmatprep.subr.mxu0 %v677
    %753 = vmatpush1.msra.mxu0 %v676
    %754 = vmatprep.subr.mxu0 %v679
    %755 = vmatpush1.msra.mxu0 %v678
    %756 = vmatprep.subr.mxu0 %v681
    %757 = vmatpush1.msra.mxu0 %v680
    %758 = vmatprep.subr.mxu0 %v683
    %759 = vmatpush1.msra.mxu0 %v682
    %760 = vmatprep.subr.mxu0 %v685
    %761 = vmatpush1.msra.mxu0 %v684
    %762 = vmatprep.subr.mxu0 %v687
    %763 = vmatpush1.msra.mxu0 %v686
    %764 = vmatprep.subr.mxu0 %v689
    %765 = vmatpush1.msra.mxu0 %v688
    %766 = vmatprep.mubr.f32.mxu0 %v625
    %767 = vmatmul.mubr.f32.gmra.mrb[0].mxu0 %v624
    %v768 = vpop.f32.mrb[0].mxu0
    %v769 = vadd.f32 %v695, %v768
    %v770 = vpop.f32.mrb[0].mxu0
    %v771 = vadd.f32 %v699, %v770
    %772 = vdwg.mxu0
    %v773 = vmax.f32 %v769, 0.0
    %v774 = vmax.f32 %v771, 0.0
    %v775 = vld [vmem:[#allocation8] sm:$0xff]
    %v776 = vld [vmem:[#allocation8 + $0x8] sm:$0xff]
    %v777 = vld [vmem:[#allocation8 + $0x10] sm:$0xff]
    %v778 = vld [vmem:[#allocation8 + $0x18] sm:$0xff]
    %v779 = vld [vmem:[#allocation8 + $0x20] sm:$0xff]
    %v780 = vld [vmem:[#allocation8 + $0x28] sm:$0xff]
    %v781 = vld [vmem:[#allocation8 + $0x30] sm:$0xff]
    %v782 = vld [vmem:[#allocation8 + $0x38] sm:$0xff]
    %v783 = vld [vmem:[#allocation8 + $0x40] sm:$0xff]
    %v784 = vld [vmem:[#allocation8 + $0x48] sm:$0xff]
    %v785 = vld [vmem:[#allocation8 + $0x50] sm:$0xff]
    %v786 = vld [vmem:[#allocation8 + $0x58] sm:$0xff]
    %v787 = vld [vmem:[#allocation8 + $0x60] sm:$0xff]
    %v788 = vld [vmem:[#allocation8 + $0x68] sm:$0xff]
    %v789 = vld [vmem:[#allocation8 + $0x70] sm:$0xff]
    %v790 = vld [vmem:[#allocation8 + $0x78] sm:$0xff]
    %v791 = vld [vmem:[#allocation8 + $0x80] sm:$0xff]
    %v792 = vld [vmem:[#allocation8 + $0x88] sm:$0xff]
    %v793 = vld [vmem:[#allocation8 + $0x90] sm:$0xff]
    %v794 = vld [vmem:[#allocation8 + $0x98] sm:$0xff]
    %v795 = vld [vmem:[#allocation8 + $0xa0] sm:$0xff]
    %v796 = vld [vmem:[#allocation8 + $0xa8] sm:$0xff]
    %v797 = vld [vmem:[#allocation8 + $0xb0] sm:$0xff]
    %v798 = vld [vmem:[#allocation8 + $0xb8] sm:$0xff]
    %v799 = vld [vmem:[#allocation8 + $0xc0] sm:$0xff]
    %v800 = vld [vmem:[#allocation8 + $0xc8] sm:$0xff]
    %v801 = vld [vmem:[#allocation8 + $0xd0] sm:$0xff]
    %v802 = vld [vmem:[#allocation8 + $0xd8] sm:$0xff]
    %v803 = vld [vmem:[#allocation8 + $0xe0] sm:$0xff]
    %v804 = vld [vmem:[#allocation8 + $0xe8] sm:$0xff]
    %v805 = vld [vmem:[#allocation8 + $0xf0] sm:$0xff]
    %v806 = vld [vmem:[#allocation8 + $0xf8] sm:$0xff]
    %v807 = vld [vmem:[#allocation8 + $0x100] sm:$0xff]
    %v808 = vld [vmem:[#allocation8 + $0x108] sm:$0xff]
    %v809 = vld [vmem:[#allocation8 + $0x110] sm:$0xff]
    %v810 = vld [vmem:[#allocation8 + $0x118] sm:$0xff]
    %v811 = vld [vmem:[#allocation8 + $0x120] sm:$0xff]
    %v812 = vld [vmem:[#allocation8 + $0x128] sm:$0xff]
    %v813 = vld [vmem:[#allocation8 + $0x130] sm:$0xff]
    %v814 = vld [vmem:[#allocation8 + $0x138] sm:$0xff]
    %v815 = vld [vmem:[#allocation8 + $0x140] sm:$0xff]
    %v816 = vld [vmem:[#allocation8 + $0x148] sm:$0xff]
    %v817 = vld [vmem:[#allocation8 + $0x150] sm:$0xff]
    %v818 = vld [vmem:[#allocation8 + $0x158] sm:$0xff]
    %v819 = vld [vmem:[#allocation8 + $0x160] sm:$0xff]
    %v820 = vld [vmem:[#allocation8 + $0x168] sm:$0xff]
    %v821 = vld [vmem:[#allocation8 + $0x170] sm:$0xff]
    %v822 = vld [vmem:[#allocation8 + $0x178] sm:$0xff]
    %v823 = vld [vmem:[#allocation8 + $0x180] sm:$0xff]
    %v824 = vld [vmem:[#allocation8 + $0x188] sm:$0xff]
    %v825 = vld [vmem:[#allocation8 + $0x190] sm:$0xff]
    %v826 = vld [vmem:[#allocation8 + $0x198] sm:$0xff]
    %v827 = vld [vmem:[#allocation8 + $0x1a0] sm:$0xff]
    %v828 = vld [vmem:[#allocation8 + $0x1a8] sm:$0xff]
    %v829 = vld [vmem:[#allocation8 + $0x1b0] sm:$0xff]
    %v830 = vld [vmem:[#allocation8 + $0x1b8] sm:$0xff]
    %v831 = vld [vmem:[#allocation8 + $0x1c0] sm:$0xff]
    %v832 = vld [vmem:[#allocation8 + $0x1c8] sm:$0xff]
    %v833 = vld [vmem:[#allocation8 + $0x1d0] sm:$0xff]
    %v834 = vld [vmem:[#allocation8 + $0x1d8] sm:$0xff]
    %v835 = vld [vmem:[#allocation8 + $0x1e0] sm:$0xff]
    %v836 = vld [vmem:[#allocation8 + $0x1e8] sm:$0xff]
    %v837 = vld [vmem:[#allocation8 + $0x1f0] sm:$0xff]
    %v838 = vld [vmem:[#allocation8 + $0x1f8] sm:$0xff]
    %v839 = vld [vmem:[%s8] sm:$0x3]
    %v841 = vlaneseq
    %v842 = vshrl.u32 %v841, 7
    %v843 = vsub.s32 0, %v842
    %v844 = vrot.slane %v839, %v843
    %v845 = vlaneseq
    %v846 = vshrl.u32 %v845, 7
    %v847 = vsub.s32 1, %v846
    %v848 = vrot.slane %v839, %v847
    %851 = vmatprep.subr.mxu0 %v776
    %852 = vmatpush1.msra.mxu0 %v775
    %853 = vmatprep.subr.mxu0 %v778
    %854 = vmatpush1.msra.mxu0 %v777
    %855 = vmatprep.subr.mxu0 %v780
    %856 = vmatpush1.msra.mxu0 %v779
    %857 = vmatprep.subr.mxu0 %v782
    %858 = vmatpush1.msra.mxu0 %v781
    %859 = vmatprep.subr.mxu0 %v784
    %860 = vmatpush1.msra.mxu0 %v783
    %861 = vmatprep.subr.mxu0 %v786
    %862 = vmatpush1.msra.mxu0 %v785
    %863 = vmatprep.subr.mxu0 %v788
    %864 = vmatpush1.msra.mxu0 %v787
    %865 = vmatprep.subr.mxu0 %v790
    %866 = vmatpush1.msra.mxu0 %v789
    %867 = vmatprep.subr.mxu0 %v792
    %868 = vmatpush1.msra.mxu0 %v791
    %869 = vmatprep.subr.mxu0 %v794
    %870 = vmatpush1.msra.mxu0 %v793
    %871 = vmatprep.subr.mxu0 %v796
    %872 = vmatpush1.msra.mxu0 %v795
    %873 = vmatprep.subr.mxu0 %v798
    %874 = vmatpush1.msra.mxu0 %v797
    %875 = vmatprep.subr.mxu0 %v800
    %876 = vmatpush1.msra.mxu0 %v799
    %877 = vmatprep.subr.mxu0 %v802
    %878 = vmatpush1.msra.mxu0 %v801
    %879 = vmatprep.subr.mxu0 %v804
    %880 = vmatpush1.msra.mxu0 %v803
    %881 = vmatprep.subr.mxu0 %v806
    %882 = vmatpush1.msra.mxu0 %v805
    %883 = vmatprep.subr.mxu0 %v808
    %884 = vmatpush1.msra.mxu0 %v807
    %885 = vmatprep.subr.mxu0 %v810
    %886 = vmatpush1.msra.mxu0 %v809
    %887 = vmatprep.subr.mxu0 %v812
    %888 = vmatpush1.msra.mxu0 %v811
    %889 = vmatprep.subr.mxu0 %v814
    %890 = vmatpush1.msra.mxu0 %v813
    %891 = vmatprep.subr.mxu0 %v816
    %892 = vmatpush1.msra.mxu0 %v815
    %893 = vmatprep.subr.mxu0 %v818
    %894 = vmatpush1.msra.mxu0 %v817
    %895 = vmatprep.subr.mxu0 %v820
    %896 = vmatpush1.msra.mxu0 %v819
    %897 = vmatprep.subr.mxu0 %v822
    %898 = vmatpush1.msra.mxu0 %v821
    %899 = vmatprep.subr.mxu0 %v824
    %900 = vmatpush1.msra.mxu0 %v823
    %901 = vmatprep.subr.mxu0 %v826
    %902 = vmatpush1.msra.mxu0 %v825
    %903 = vmatprep.subr.mxu0 %v828
    %904 = vmatpush1.msra.mxu0 %v827
    %905 = vmatprep.subr.mxu0 %v830
    %906 = vmatpush1.msra.mxu0 %v829
    %907 = vmatprep.subr.mxu0 %v832
    %908 = vmatpush1.msra.mxu0 %v831
    %909 = vmatprep.subr.mxu0 %v834
    %910 = vmatpush1.msra.mxu0 %v833
    %911 = vmatprep.subr.mxu0 %v836
    %912 = vmatpush1.msra.mxu0 %v835
    %913 = vmatprep.subr.mxu0 %v838
    %914 = vmatpush1.msra.mxu0 %v837
    %915 = vmatprep.mubr.f32.mxu0 %v774
    %916 = vmatmul.mubr.f32.gmra.mrb[0].mxu0 %v773
    %v917 = vpop.f32.mrb[0].mxu0
    %v918 = vadd.f32 %v844, %v917
    %v919 = vpop.f32.mrb[0].mxu0
    %v920 = vadd.f32 %v848, %v919
    %921 = vdwg.mxu0
    %v922 = vmax.f32 %v918, 0.0
    %v923 = vmax.f32 %v920, 0.0
    %v924 = vld [vmem:[#allocation10] sm:$0xff]
    %v925 = vld [vmem:[#allocation10 + $0x8] sm:$0xff]
    %v926 = vld [vmem:[#allocation10 + $0x10] sm:$0xff]
    %v927 = vld [vmem:[#allocation10 + $0x18] sm:$0xff]
    %v928 = vld [vmem:[#allocation10 + $0x20] sm:$0xff]
    %v929 = vld [vmem:[#allocation10 + $0x28] sm:$0xff]
    %v930 = vld [vmem:[#allocation10 + $0x30] sm:$0xff]
    %v931 = vld [vmem:[#allocation10 + $0x38] sm:$0xff]
    %v932 = vld [vmem:[#allocation10 + $0x40] sm:$0xff]
    %v933 = vld [vmem:[#allocation10 + $0x48] sm:$0xff]
    %v934 = vld [vmem:[#allocation10 + $0x50] sm:$0xff]
    %v935 = vld [vmem:[#allocation10 + $0x58] sm:$0xff]
    %v936 = vld [vmem:[#allocation10 + $0x60] sm:$0xff]
    %v937 = vld [vmem:[#allocation10 + $0x68] sm:$0xff]
    %v938 = vld [vmem:[#allocation10 + $0x70] sm:$0xff]
    %v939 = vld [vmem:[#allocation10 + $0x78] sm:$0xff]
    %v940 = vld [vmem:[#allocation10 + $0x80] sm:$0xff]
    %v941 = vld [vmem:[#allocation10 + $0x88] sm:$0xff]
    %v942 = vld [vmem:[#allocation10 + $0x90] sm:$0xff]
    %v943 = vld [vmem:[#allocation10 + $0x98] sm:$0xff]
    %v944 = vld [vmem:[#allocation10 + $0xa0] sm:$0xff]
    %v945 = vld [vmem:[#allocation10 + $0xa8] sm:$0xff]
    %v946 = vld [vmem:[#allocation10 + $0xb0] sm:$0xff]
    %v947 = vld [vmem:[#allocation10 + $0xb8] sm:$0xff]
    %v948 = vld [vmem:[#allocation10 + $0xc0] sm:$0xff]
    %v949 = vld [vmem:[#allocation10 + $0xc8] sm:$0xff]
    %v950 = vld [vmem:[#allocation10 + $0xd0] sm:$0xff]
    %v951 = vld [vmem:[#allocation10 + $0xd8] sm:$0xff]
    %v952 = vld [vmem:[#allocation10 + $0xe0] sm:$0xff]
    %v953 = vld [vmem:[#allocation10 + $0xe8] sm:$0xff]
    %v954 = vld [vmem:[#allocation10 + $0xf0] sm:$0xff]
    %v955 = vld [vmem:[#allocation10 + $0xf8] sm:$0xff]
    %v956 = vld [vmem:[#allocation10 + $0x100] sm:$0xff]
    %v957 = vld [vmem:[#allocation10 + $0x108] sm:$0xff]
    %v958 = vld [vmem:[#allocation10 + $0x110] sm:$0xff]
    %v959 = vld [vmem:[#allocation10 + $0x118] sm:$0xff]
    %v960 = vld [vmem:[#allocation10 + $0x120] sm:$0xff]
    %v961 = vld [vmem:[#allocation10 + $0x128] sm:$0xff]
    %v962 = vld [vmem:[#allocation10 + $0x130] sm:$0xff]
    %v963 = vld [vmem:[#allocation10 + $0x138] sm:$0xff]
    %v964 = vld [vmem:[#allocation10 + $0x140] sm:$0xff]
    %v965 = vld [vmem:[#allocation10 + $0x148] sm:$0xff]
    %v966 = vld [vmem:[#allocation10 + $0x150] sm:$0xff]
    %v967 = vld [vmem:[#allocation10 + $0x158] sm:$0xff]
    %v968 = vld [vmem:[#allocation10 + $0x160] sm:$0xff]
    %v969 = vld [vmem:[#allocation10 + $0x168] sm:$0xff]
    %v970 = vld [vmem:[#allocation10 + $0x170] sm:$0xff]
    %v971 = vld [vmem:[#allocation10 + $0x178] sm:$0xff]
    %v972 = vld [vmem:[#allocation10 + $0x180] sm:$0xff]
    %v973 = vld [vmem:[#allocation10 + $0x188] sm:$0xff]
    %v974 = vld [vmem:[#allocation10 + $0x190] sm:$0xff]
    %v975 = vld [vmem:[#allocation10 + $0x198] sm:$0xff]
    %v976 = vld [vmem:[#allocation10 + $0x1a0] sm:$0xff]
    %v977 = vld [vmem:[#allocation10 + $0x1a8] sm:$0xff]
    %v978 = vld [vmem:[#allocation10 + $0x1b0] sm:$0xff]
    %v979 = vld [vmem:[#allocation10 + $0x1b8] sm:$0xff]
    %v980 = vld [vmem:[#allocation10 + $0x1c0] sm:$0xff]
    %v981 = vld [vmem:[#allocation10 + $0x1c8] sm:$0xff]
    %v982 = vld [vmem:[#allocation10 + $0x1d0] sm:$0xff]
    %v983 = vld [vmem:[#allocation10 + $0x1d8] sm:$0xff]
    %v984 = vld [vmem:[#allocation10 + $0x1e0] sm:$0xff]
    %v985 = vld [vmem:[#allocation10 + $0x1e8] sm:$0xff]
    %v986 = vld [vmem:[#allocation10 + $0x1f0] sm:$0xff]
    %v987 = vld [vmem:[#allocation10 + $0x1f8] sm:$0xff]
    %v988 = vld [vmem:[%s10] sm:$0x3]
    %v990 = vlaneseq
    %v991 = vshrl.u32 %v990, 7
    %v992 = vsub.s32 0, %v991
    %v993 = vrot.slane %v988, %v992
    %v994 = vlaneseq
    %v995 = vshrl.u32 %v994, 7
    %v996 = vsub.s32 1, %v995
    %v997 = vrot.slane %v988, %v996
    %1000 = vmatprep.subr.mxu0 %v925
    %1001 = vmatpush1.msra.mxu0 %v924
    %1002 = vmatprep.subr.mxu0 %v927
    %1003 = vmatpush1.msra.mxu0 %v926
    %1004 = vmatprep.subr.mxu0 %v929
    %1005 = vmatpush1.msra.mxu0 %v928
    %1006 = vmatprep.subr.mxu0 %v931
    %1007 = vmatpush1.msra.mxu0 %v930
    %1008 = vmatprep.subr.mxu0 %v933
    %1009 = vmatpush1.msra.mxu0 %v932
    %1010 = vmatprep.subr.mxu0 %v935
    %1011 = vmatpush1.msra.mxu0 %v934
    %1012 = vmatprep.subr.mxu0 %v937
    %1013 = vmatpush1.msra.mxu0 %v936
    %1014 = vmatprep.subr.mxu0 %v939
    %1015 = vmatpush1.msra.mxu0 %v938
    %1016 = vmatprep.subr.mxu0 %v941
    %1017 = vmatpush1.msra.mxu0 %v940
    %1018 = vmatprep.subr.mxu0 %v943
    %1019 = vmatpush1.msra.mxu0 %v942
    %1020 = vmatprep.subr.mxu0 %v945
    %1021 = vmatpush1.msra.mxu0 %v944
    %1022 = vmatprep.subr.mxu0 %v947
    %1023 = vmatpush1.msra.mxu0 %v946
    %1024 = vmatprep.subr.mxu0 %v949
    %1025 = vmatpush1.msra.mxu0 %v948
    %1026 = vmatprep.subr.mxu0 %v951
    %1027 = vmatpush1.msra.mxu0 %v950
    %1028 = vmatprep.subr.mxu0 %v953
    %1029 = vmatpush1.msra.mxu0 %v952
    %1030 = vmatprep.subr.mxu0 %v955
    %1031 = vmatpush1.msra.mxu0 %v954
    %1032 = vmatprep.subr.mxu0 %v957
    %1033 = vmatpush1.msra.mxu0 %v956
    %1034 = vmatprep.subr.mxu0 %v959
    %1035 = vmatpush1.msra.mxu0 %v958
    %1036 = vmatprep.subr.mxu0 %v961
    %1037 = vmatpush1.msra.mxu0 %v960
    %1038 = vmatprep.subr.mxu0 %v963
    %1039 = vmatpush1.msra.mxu0 %v962
    %1040 = vmatprep.subr.mxu0 %v965
    %1041 = vmatpush1.msra.mxu0 %v964
    %1042 = vmatprep.subr.mxu0 %v967
    %1043 = vmatpush1.msra.mxu0 %v966
    %1044 = vmatprep.subr.mxu0 %v969
    %1045 = vmatpush1.msra.mxu0 %v968
    %1046 = vmatprep.subr.mxu0 %v971
    %1047 = vmatpush1.msra.mxu0 %v970
    %1048 = vmatprep.subr.mxu0 %v973
    %1049 = vmatpush1.msra.mxu0 %v972
    %1050 = vmatprep.subr.mxu0 %v975
    %1051 = vmatpush1.msra.mxu0 %v974
    %1052 = vmatprep.subr.mxu0 %v977
    %1053 = vmatpush1.msra.mxu0 %v976
    %1054 = vmatprep.subr.mxu0 %v979
    %1055 = vmatpush1.msra.mxu0 %v978
    %1056 = vmatprep.subr.mxu0 %v981
    %1057 = vmatpush1.msra.mxu0 %v980
    %1058 = vmatprep.subr.mxu0 %v983
    %1059 = vmatpush1.msra.mxu0 %v982
    %1060 = vmatprep.subr.mxu0 %v985
    %1061 = vmatpush1.msra.mxu0 %v984
    %1062 = vmatprep.subr.mxu0 %v987
    %1063 = vmatpush1.msra.mxu0 %v986
    %1064 = vmatprep.mubr.f32.mxu0 %v923
    %1065 = vmatmul.mubr.f32.gmra.mrb[0].mxu0 %v922
    %v1066 = vpop.f32.mrb[0].mxu0
    %v1067 = vadd.f32 %v993, %v1066
    %v1068 = vpop.f32.mrb[0].mxu0
    %v1069 = vadd.f32 %v997, %v1068
    %1070 = vdwg.mxu0
    %1071 = vst [vmem:[#allocation11] sm:$0xff] %v1067
    %v1072 = vtanh.pop %v1069
    %1073 = vst [vmem:[%s12] sm:$0xff] %v1072
    // Predicated region
    $region66: #{mlp_forward.1} parent=1 // pred_check
      _
    $region67: #{mlp_forward.1} parent=1 // pred_check_branch
      %1075 = sbr.rel (0) target = $region69
    $region68: #{mlp_forward.1} parent=1 // pred_region
      %s1077 = ssub.s32 128, 128
      %1078 = vsyncadd [#allocation4], %s1077
      %s1080 = sshll.u32 [#allocation11], 4
      %s1081 = int_to_ptr.vmem [resolvable:$true] %s1080
      %1083 = dma.vmem_to_hbm [thread:$0]  %s1081, 128, %s11, [#allocation4]
    $region69: #{mlp_forward.1} parent=1 // pred_fallthru
      _
    // Predicated region
    $region70: #{mlp_forward.1} parent=1 // pred_check
      _
    $region71: #{mlp_forward.1} parent=1 // pred_check_branch
      %1085 = sbr.rel (0) target = $region73
    $region72: #{mlp_forward.1} parent=1 // pred_region
      _
    $region73: #{mlp_forward.1} parent=1 // pred_fallthru
      _
    // Predicated region
    $region74: #{mlp_forward.1} parent=1 // pred_check
      _
    $region75: #{mlp_forward.1} parent=1 // pred_check_branch
      %1087 = sbr.rel (0) target = $region77
    $region76: #{mlp_forward.1} parent=1 // pred_region
      %1088 = dma.done [#allocation4], 128
    $region77: #{mlp_forward.1} parent=1 // pred_fallthru
      _
    // Predicated region
    $region78: #{mlp_forward.1} parent=1 // pred_check
      _
    $region79: #{mlp_forward.1} parent=1 // pred_check_branch
      %1090 = sbr.rel (0) target = $region81
    $region80: #{mlp_forward.1} parent=1 // pred_region
      _
    $region81: #{mlp_forward.1} parent=1 // pred_fallthru
      _
    %1091 = vsyncpa [#allocation3], 1
    %1092 = vsyncpa [#allocation6], 1
    %1093 = vsyncpa [#allocation9], 1
    %1094 = vsyncpa [#allocation4], 1

</llo_original>
